<compile_context>
chip_gen: v7x
topology: tpu7x:2x2x1
jax: 0.10.0
libtpu: 0.0.40
codegen_flags: <defaults>
</compile_context>

<pallas_src>
import functools

import jax
import jax.numpy as jnp
from jax.experimental import pallas as pl
from jax.experimental.pallas import tpu as pltpu

LN_EPS = 1e-5          # PyTorch nn.LayerNorm default eps
OUT_PAD = 128          # lane-dense fused head output width (>= 2*action_dim)


def _round_up(n, m):
    return ((n + m - 1) // m) * m


def _has_bf16_eup():
    """bf16 VPU/EUP path exists on v6e/v7x; keep f32 tanh on older chips."""
    try:
        kind = jax.devices()[0].device_kind.lower()
    except Exception:
        return False
    return ("v6" in kind) or ("v7" in kind)


def actor_kernel(x_ref, w1_ref, ln1_ref, w2_ref, ln2_ref, wh_ref, bh_ref,
                 out_ref, *, action_dim, bf16_tanh):
    """One batch tile of the Actor forward. MXU operands bf16, accumulation f32."""
    f32, bf16 = jnp.float32, jnp.bfloat16

    def ln_tanh(h, ln):
        # ln rows: [0]=linear bias, [1]=gamma, [2]=beta
        # single-pass LayerNorm: the two lane reductions are independent.
        h = h + ln[0:1, :]
        inv_w = 1.0 / h.shape[-1]                       # static Python constant
        s1 = jnp.sum(h, axis=-1, keepdims=True)
        s2 = jnp.sum(h * h, axis=-1, keepdims=True)
        mu = s1 * inv_w
        var = s2 * inv_w - mu * mu
        y = (h - mu) * jax.lax.rsqrt(var + LN_EPS) * ln[1:2, :] + ln[2:3, :]
        if bf16_tanh:
            return jnp.tanh(y.astype(bf16))             # bf16 EUP (v6e/v7x)
        return jnp.tanh(y).astype(bf16)                 # f32 EUP (v5e & older)

    x = x_ref[...].astype(bf16)                         # cast in-kernel (no wrapper copy)

    # Layer 1: Linear(state_dim -> 1024) + LayerNorm + tanh
    h1 = ln_tanh(jnp.dot(x, w1_ref[...], preferred_element_type=f32), ln1_ref[...])

    # Layer 2: Linear(1024 -> H) + LayerNorm + tanh
    h2 = ln_tanh(jnp.dot(h1, w2_ref[...], preferred_element_type=f32), ln2_ref[...])

    # Fused heads: [mean | log_std | zero-pad] in one lane-dense matmul.
    y = jnp.dot(h2, wh_ref[...], preferred_element_type=f32) + bh_ref[...]
    col = jax.lax.broadcasted_iota(jnp.int32, y.shape, 1)
    is_logstd = (col >= action_dim) & (col < 2 * action_dim)
    out_ref[...] = jnp.where(is_logstd, jnp.clip(y, -5.0, 2.0), y)


def prepare_params(params):
    """One-time weight preprocessing. Call once, reuse the result every forward."""
    bf16, f32 = jnp.bfloat16, jnp.float32
    H = params["w2"].shape[1]
    A = params["wm"].shape[1]
    assert 2 * A <= OUT_PAD, "action_dim too large for fused lane-dense head"

    w1 = params["w1"].astype(bf16)                      # [state_dim, 1024]
    w2 = params["w2"].astype(bf16)                      # [1024, H]

    # consolidated LayerNorm params: rows = (linear bias, gamma, beta)
    ln1 = jnp.concatenate([params["b1"], params["g1"], params["be1"]], axis=0).astype(f32)
    ln2 = jnp.concatenate([params["b2"], params["g2"], params["be2"]], axis=0).astype(f32)

    # fused, lane-padded heads
    wh = jnp.zeros((H, OUT_PAD), bf16)
    wh = wh.at[:, :A].set(params["wm"].astype(bf16))
    wh = wh.at[:, A:2 * A].set(params["ws"].astype(bf16))
    bh = jnp.zeros((1, OUT_PAD), f32)
    bh = bh.at[:, :A].set(params["bm"].astype(f32))
    bh = bh.at[:, A:2 * A].set(params["bs"].astype(f32))

    return dict(w1=w1, ln1=ln1, w2=w2, ln2=ln2, wh=wh, bh=bh, action_dim=int(A))


def actor_forward(x, prep, *, tb_max=512, bf16_tanh=None):
    """Pallas forward. x: [B, state_dim] f32, prep: prepare_params(...) output.
    Returns (mean, log_std), each [B, action_dim] f32."""
    B, state_dim = x.shape
    A = prep["action_dim"]
    if bf16_tanh is None:
        bf16_tanh = _has_bf16_eup()

    # --- batch tiling: biggest tile up to tb_max; even grid when multi-tile ---
    TB = min(tb_max, _round_up(B, 8))
    n_tiles = pl.cdiv(_round_up(B, 8), TB)
    if n_tiles > 1 and n_tiles % 2 == 1:                # balance v7x's 2 TCs
        n_tiles += 1
    Bp = n_tiles * TB

    if Bp != B:
        xp = jnp.zeros((Bp, state_dim), x.dtype).at[:B, :].set(x)
    else:
        xp = x                                          # no pad / no extra copy

    kernel = functools.partial(actor_kernel, action_dim=A, bf16_tanh=bf16_tanh)

    out = pl.pallas_call(
        kernel,
        out_shape=jax.ShapeDtypeStruct((Bp, OUT_PAD), jnp.float32),
        grid=(n_tiles,),
        in_specs=[
            pl.BlockSpec((TB, state_dim), lambda i: (i, 0)),       # x (tiled on B)
            pl.BlockSpec(prep["w1"].shape, lambda i: (0, 0)),      # W1  (VMEM-resident)
            pl.BlockSpec(prep["ln1"].shape, lambda i: (0, 0)),     # b1/g1/be1
            pl.BlockSpec(prep["w2"].shape, lambda i: (0, 0)),      # W2
            pl.BlockSpec(prep["ln2"].shape, lambda i: (0, 0)),     # b2/g2/be2
            pl.BlockSpec(prep["wh"].shape, lambda i: (0, 0)),      # fused head W
            pl.BlockSpec(prep["bh"].shape, lambda i: (0, 0)),      # fused head b
        ],
        out_specs=pl.BlockSpec((TB, OUT_PAD), lambda i: (i, 0)),
        compiler_params=pltpu.CompilerParams(
            dimension_semantics=("parallel",)),
    )(xp, prep["w1"], prep["ln1"], prep["w2"], prep["ln2"], prep["wh"], prep["bh"])

    mean = out[:B, :A]
    log_std = out[:B, A:2 * A]
    return mean, log_std


def init_params(key, state_dim, hidden_width, action_dim):
    """Deterministic synthetic parameters (shapes match the PyTorch module)."""
    ks = jax.random.split(key, 12)
    f32 = jnp.float32

    def lin(kw, kb, fan_in, fan_out):
        # weight stored pre-transposed as [in, out]; bias as [1, out]
        w = jax.random.normal(kw, (fan_in, fan_out), f32) / jnp.sqrt(f32(fan_in))
        b = 0.01 * jax.random.normal(kb, (1, fan_out), f32)
        return w, b

    w1, b1 = lin(ks[0], ks[1], state_dim, 1024)
    w2, b2 = lin(ks[2], ks[3], 1024, hidden_width)
    wm, bm = lin(ks[4], ks[5], hidden_width, action_dim)
    ws, bs = lin(ks[6], ks[7], hidden_width, action_dim)

    # LayerNorm affine params (non-trivial values to exercise the math)
    g1 = 1.0 + 0.1 * jax.random.normal(ks[8], (1, 1024), f32)
    be1 = 0.1 * jax.random.normal(ks[9], (1, 1024), f32)
    g2 = 1.0 + 0.1 * jax.random.normal(ks[10], (1, hidden_width), f32)
    be2 = 0.1 * jax.random.normal(ks[11], (1, hidden_width), f32)

    return dict(w1=w1, b1=b1, g1=g1, be1=be1,
                w2=w2, b2=b2, g2=g2, be2=be2,
                wm=wm, bm=bm, ws=ws, bs=bs)


def actor_forward_ref(x, p):
    """Plain-JAX f32 reference mirroring the PyTorch forward."""
    def ln(h, g, b):
        mu = jnp.mean(h, axis=-1, keepdims=True)
        var = jnp.mean(jnp.square(h - mu), axis=-1, keepdims=True)
        return (h - mu) / jnp.sqrt(var + LN_EPS) * g + b

    h1 = jnp.tanh(ln(x @ p["w1"] + p["b1"], p["g1"], p["be1"]))
    h2 = jnp.tanh(ln(h1 @ p["w2"] + p["b2"], p["g2"], p["be2"]))
    mean = h2 @ p["wm"] + p["bm"]
    log_std = jnp.clip(h2 @ p["ws"] + p["bs"], -5.0, 2.0)
    return mean, log_std


if __name__ == "__main__":
    B, state_dim, hidden_width, action_dim = 8, 32, 128, 4

    key = jax.random.PRNGKey(0)
    kx, kp = jax.random.split(key)
    x = jax.random.normal(kx, (B, state_dim), jnp.float32)
    params = init_params(kp, state_dim, hidden_width, action_dim)

    prep = jax.block_until_ready(prepare_params(params))   # one-time weight prep

    mean, log_std = jax.block_until_ready(actor_forward(x, prep))

    mean_ref, log_std_ref = actor_forward_ref(x, params)
    assert mean.shape == (B, action_dim) and log_std.shape == (B, action_dim)
    # bf16 matmul operands -> compare against f32 reference with loose tolerance
    assert jnp.allclose(mean, mean_ref, rtol=3e-2, atol=3e-2)
    assert jnp.allclose(log_std, log_std_ref, rtol=3e-2, atol=3e-2)

    print("KERNEL_OK")
</pallas_src>

<mosaic_0001>
module attributes {stable_mosaic.version = 11 : i64} {
  func.func @actor_kernel(%arg0: i32, %arg1: memref<8x32xf32, #tpu.memory_space<vmem>>, %arg2: memref<32x1024xbf16, #tpu.memory_space<vmem>>, %arg3: memref<3x1024xf32, #tpu.memory_space<vmem>>, %arg4: memref<1024x128xbf16, #tpu.memory_space<vmem>>, %arg5: memref<3x128xf32, #tpu.memory_space<vmem>>, %arg6: memref<128x128xbf16, #tpu.memory_space<vmem>>, %arg7: memref<1x128xf32, #tpu.memory_space<vmem>>, %arg8: memref<8x128xf32, #tpu.memory_space<vmem>>) attributes {dimension_semantics = [#tpu.dimension_semantics<parallel>], iteration_bounds = array<i64: 1>, scalar_prefetch = 0 : i64, scratch_operands = 0 : i64, tpu.core_type = #tpu.core_type<tc>, window_params = [{transform_indices = @transform_0, window_bounds = array<i64: 8, 32>}, {pipeline_mode = #tpu.pipeline_mode<synchronous>, transform_indices = @transform_1, window_bounds = array<i64: 32, 1024>}, {pipeline_mode = #tpu.pipeline_mode<synchronous>, transform_indices = @transform_2, window_bounds = array<i64: 3, 1024>}, {pipeline_mode = #tpu.pipeline_mode<synchronous>, transform_indices = @transform_3, window_bounds = array<i64: 1024, 128>}, {pipeline_mode = #tpu.pipeline_mode<synchronous>, transform_indices = @transform_4, window_bounds = array<i64: 3, 128>}, {pipeline_mode = #tpu.pipeline_mode<synchronous>, transform_indices = @transform_5, window_bounds = array<i64: 128, 128>}, {pipeline_mode = #tpu.pipeline_mode<synchronous>, transform_indices = @transform_6, window_bounds = array<i64: 1, 128>}, {transform_indices = @transform_7, window_bounds = array<i64: 8, 128>}]} {
    %c0 = arith.constant 0 : index
    %c0_0 = arith.constant 0 : index
    %0 = vector.load %arg1[%c0, %c0_0] : memref<8x32xf32, #tpu.memory_space<vmem>>, vector<8x32xf32>
    %1 = arith.truncf %0 : vector<8x32xf32> to vector<8x32xbf16>
    %c0_1 = arith.constant 0 : index
    %c0_2 = arith.constant 0 : index
    %2 = vector.load %arg2[%c0_1, %c0_2] : memref<32x1024xbf16, #tpu.memory_space<vmem>>, vector<32x1024xbf16>
    %cst = arith.constant dense<0.000000e+00> : vector<8x1024xf32>
    %3 = tpu.matmul %1, %2, %cst {dimension_numbers = #tpu.dot_dimension_numbers<[1], [0], [0], [1], [0, 0, 1, 1], [], []>} : vector<8x32xbf16>, vector<32x1024xbf16>, vector<8x1024xf32> -> vector<8x1024xf32>
    %c0_3 = arith.constant 0 : index
    %c0_4 = arith.constant 0 : index
    %4 = vector.load %arg3[%c0_3, %c0_4] : memref<3x1024xf32, #tpu.memory_space<vmem>>, vector<3x1024xf32>
    %5 = vector.extract_strided_slice %4 {offsets = [0, 0], sizes = [1, 1024], strides = [1, 1]} : vector<3x1024xf32> to vector<1x1024xf32>
    %6 = vector.broadcast %5 : vector<1x1024xf32> to vector<8x1024xf32>
    %7 = arith.addf %3, %6 : vector<8x1024xf32>
    %cst_5 = arith.constant dense<0.000000e+00> : vector<8xf32>
    %8 = vector.multi_reduction <add>, %7, %cst_5 [1] : vector<8x1024xf32> to vector<8xf32>
    %9 = vector.shape_cast %8 : vector<8xf32> to vector<8x1xf32>
    %10 = arith.mulf %7, %7 : vector<8x1024xf32>
    %cst_6 = arith.constant dense<0.000000e+00> : vector<8xf32>
    %11 = vector.multi_reduction <add>, %10, %cst_6 [1] : vector<8x1024xf32> to vector<8xf32>
    %12 = vector.shape_cast %11 : vector<8xf32> to vector<8x1xf32>
    %cst_7 = arith.constant 9.765625E-4 : f32
    %13 = vector.broadcast %cst_7 : f32 to vector<8x1xf32>
    %14 = arith.mulf %9, %13 : vector<8x1xf32>
    %cst_8 = arith.constant 9.765625E-4 : f32
    %15 = vector.broadcast %cst_8 : f32 to vector<8x1xf32>
    %16 = arith.mulf %12, %15 : vector<8x1xf32>
    %17 = arith.mulf %14, %14 : vector<8x1xf32>
    %18 = arith.subf %16, %17 : vector<8x1xf32>
    %19 = vector.broadcast %14 : vector<8x1xf32> to vector<8x1024xf32>
    %20 = arith.subf %7, %19 : vector<8x1024xf32>
    %cst_9 = arith.constant 9.99999974E-6 : f32
    %21 = vector.broadcast %cst_9 : f32 to vector<8x1xf32>
    %22 = arith.addf %18, %21 : vector<8x1xf32>
    %23 = math.rsqrt %22 : vector<8x1xf32>
    %24 = vector.broadcast %23 : vector<8x1xf32> to vector<8x1024xf32>
    %25 = arith.mulf %20, %24 : vector<8x1024xf32>
    %26 = vector.extract_strided_slice %4 {offsets = [1, 0], sizes = [1, 1024], strides = [1, 1]} : vector<3x1024xf32> to vector<1x1024xf32>
    %27 = vector.broadcast %26 : vector<1x1024xf32> to vector<8x1024xf32>
    %28 = arith.mulf %25, %27 : vector<8x1024xf32>
    %29 = vector.extract_strided_slice %4 {offsets = [2, 0], sizes = [1, 1024], strides = [1, 1]} : vector<3x1024xf32> to vector<1x1024xf32>
    %30 = vector.broadcast %29 : vector<1x1024xf32> to vector<8x1024xf32>
    %31 = arith.addf %28, %30 : vector<8x1024xf32>
    %32 = math.tanh %31 : vector<8x1024xf32>
    %33 = arith.truncf %32 : vector<8x1024xf32> to vector<8x1024xbf16>
    %c0_10 = arith.constant 0 : index
    %c0_11 = arith.constant 0 : index
    %34 = vector.load %arg4[%c0_10, %c0_11] : memref<1024x128xbf16, #tpu.memory_space<vmem>>, vector<1024x128xbf16>
    %cst_12 = arith.constant dense<0.000000e+00> : vector<8x128xf32>
    %35 = tpu.matmul %33, %34, %cst_12 {dimension_numbers = #tpu.dot_dimension_numbers<[1], [0], [0], [1], [0, 0, 1, 1], [], []>} : vector<8x1024xbf16>, vector<1024x128xbf16>, vector<8x128xf32> -> vector<8x128xf32>
    %c0_13 = arith.constant 0 : index
    %c0_14 = arith.constant 0 : index
    %36 = vector.load %arg5[%c0_13, %c0_14] : memref<3x128xf32, #tpu.memory_space<vmem>>, vector<3x128xf32>
    %37 = vector.extract_strided_slice %36 {offsets = [0, 0], sizes = [1, 128], strides = [1, 1]} : vector<3x128xf32> to vector<1x128xf32>
    %38 = vector.broadcast %37 : vector<1x128xf32> to vector<8x128xf32>
    %39 = arith.addf %35, %38 : vector<8x128xf32>
    %cst_15 = arith.constant dense<0.000000e+00> : vector<8xf32>
    %40 = vector.multi_reduction <add>, %39, %cst_15 [1] : vector<8x128xf32> to vector<8xf32>
    %41 = vector.shape_cast %40 : vector<8xf32> to vector<8x1xf32>
    %42 = arith.mulf %39, %39 : vector<8x128xf32>
    %cst_16 = arith.constant dense<0.000000e+00> : vector<8xf32>
    %43 = vector.multi_reduction <add>, %42, %cst_16 [1] : vector<8x128xf32> to vector<8xf32>
    %44 = vector.shape_cast %43 : vector<8xf32> to vector<8x1xf32>
    %cst_17 = arith.constant 7.812500e-03 : f32
    %45 = vector.broadcast %cst_17 : f32 to vector<8x1xf32>
    %46 = arith.mulf %41, %45 : vector<8x1xf32>
    %cst_18 = arith.constant 7.812500e-03 : f32
    %47 = vector.broadcast %cst_18 : f32 to vector<8x1xf32>
    %48 = arith.mulf %44, %47 : vector<8x1xf32>
    %49 = arith.mulf %46, %46 : vector<8x1xf32>
    %50 = arith.subf %48, %49 : vector<8x1xf32>
    %51 = vector.broadcast %46 : vector<8x1xf32> to vector<8x128xf32>
    %52 = arith.subf %39, %51 : vector<8x128xf32>
    %cst_19 = arith.constant 9.99999974E-6 : f32
    %53 = vector.broadcast %cst_19 : f32 to vector<8x1xf32>
    %54 = arith.addf %50, %53 : vector<8x1xf32>
    %55 = math.rsqrt %54 : vector<8x1xf32>
    %56 = vector.broadcast %55 : vector<8x1xf32> to vector<8x128xf32>
    %57 = arith.mulf %52, %56 : vector<8x128xf32>
    %58 = vector.extract_strided_slice %36 {offsets = [1, 0], sizes = [1, 128], strides = [1, 1]} : vector<3x128xf32> to vector<1x128xf32>
    %59 = vector.broadcast %58 : vector<1x128xf32> to vector<8x128xf32>
    %60 = arith.mulf %57, %59 : vector<8x128xf32>
    %61 = vector.extract_strided_slice %36 {offsets = [2, 0], sizes = [1, 128], strides = [1, 1]} : vector<3x128xf32> to vector<1x128xf32>
    %62 = vector.broadcast %61 : vector<1x128xf32> to vector<8x128xf32>
    %63 = arith.addf %60, %62 : vector<8x128xf32>
    %64 = math.tanh %63 : vector<8x128xf32>
    %65 = arith.truncf %64 : vector<8x128xf32> to vector<8x128xbf16>
    %c0_20 = arith.constant 0 : index
    %c0_21 = arith.constant 0 : index
    %66 = vector.load %arg6[%c0_20, %c0_21] : memref<128x128xbf16, #tpu.memory_space<vmem>>, vector<128x128xbf16>
    %cst_22 = arith.constant dense<0.000000e+00> : vector<8x128xf32>
    %67 = tpu.matmul %65, %66, %cst_22 {dimension_numbers = #tpu.dot_dimension_numbers<[1], [0], [0], [1], [0, 0, 1, 1], [], []>} : vector<8x128xbf16>, vector<128x128xbf16>, vector<8x128xf32> -> vector<8x128xf32>
    %c0_23 = arith.constant 0 : index
    %c0_24 = arith.constant 0 : index
    %68 = vector.load %arg7[%c0_23, %c0_24] : memref<1x128xf32, #tpu.memory_space<vmem>>, vector<1x128xf32>
    %69 = vector.broadcast %68 : vector<1x128xf32> to vector<8x128xf32>
    %70 = arith.addf %67, %69 : vector<8x128xf32>
    %71 = tpu.iota {dimensions = array<i32: 1>} : vector<8x128xi32>
    %c4_i32 = arith.constant 4 : i32
    %72 = vector.broadcast %c4_i32 : i32 to vector<8x128xi32>
    %73 = arith.cmpi sge, %71, %72 : vector<8x128xi32>
    %c8_i32 = arith.constant 8 : i32
    %74 = vector.broadcast %c8_i32 : i32 to vector<8x128xi32>
    %75 = arith.cmpi slt, %71, %74 : vector<8x128xi32>
    %76 = arith.andi %73, %75 : vector<8x128xi1>
    %cst_25 = arith.constant -5.000000e+00 : f32
    %cst_26 = arith.constant 2.000000e+00 : f32
    %77 = vector.broadcast %cst_25 : f32 to vector<8x128xf32>
    %78 = arith.maximumf %77, %70 : vector<8x128xf32>
    %79 = vector.broadcast %cst_26 : f32 to vector<8x128xf32>
    %80 = arith.minimumf %79, %78 : vector<8x128xf32>
    %81 = arith.select %76, %80, %70 : vector<8x128xi1>, vector<8x128xf32>
    %c0_27 = arith.constant 0 : index
    %c0_28 = arith.constant 0 : index
    %82 = vector.load %arg8[%c0_27, %c0_28] : memref<8x128xf32, #tpu.memory_space<vmem>>, vector<8x128xf32>
    tpu.vector_store %arg8[%c0_27, %c0_28], %81 {strides = array<i32>} : memref<8x128xf32, #tpu.memory_space<vmem>>, vector<8x128xf32>,
    return
  }
  func.func @transform_0(%arg0: i32) -> (i32, i32) {
    %c0_i32 = arith.constant 0 : i32
    %c0_i32_0 = arith.constant 0 : i32
    return %arg0, %c0_i32 : i32, i32
  }
  func.func @transform_1(%arg0: i32) -> (i32, i32) {
    %c0_i32 = arith.constant 0 : i32
    %c0_i32_0 = arith.constant 0 : i32
    %c0_i32_1 = arith.constant 0 : i32
    return %c0_i32, %c0_i32_0 : i32, i32
  }
  func.func @transform_2(%arg0: i32) -> (i32, i32) {
    %c0_i32 = arith.constant 0 : i32
    %c0_i32_0 = arith.constant 0 : i32
    %c0_i32_1 = arith.constant 0 : i32
    return %c0_i32, %c0_i32_0 : i32, i32
  }
  func.func @transform_3(%arg0: i32) -> (i32, i32) {
    %c0_i32 = arith.constant 0 : i32
    %c0_i32_0 = arith.constant 0 : i32
    %c0_i32_1 = arith.constant 0 : i32
    return %c0_i32, %c0_i32_0 : i32, i32
  }
  func.func @transform_4(%arg0: i32) -> (i32, i32) {
    %c0_i32 = arith.constant 0 : i32
    %c0_i32_0 = arith.constant 0 : i32
    %c0_i32_1 = arith.constant 0 : i32
    return %c0_i32, %c0_i32_0 : i32, i32
  }
  func.func @transform_5(%arg0: i32) -> (i32, i32) {
    %c0_i32 = arith.constant 0 : i32
    %c0_i32_0 = arith.constant 0 : i32
    %c0_i32_1 = arith.constant 0 : i32
    return %c0_i32, %c0_i32_0 : i32, i32
  }
  func.func @transform_6(%arg0: i32) -> (i32, i32) {
    %c0_i32 = arith.constant 0 : i32
    %c0_i32_0 = arith.constant 0 : i32
    %c0_i32_1 = arith.constant 0 : i32
    return %c0_i32, %c0_i32_0 : i32, i32
  }
  func.func @transform_7(%arg0: i32) -> (i32, i32) {
    %c0_i32 = arith.constant 0 : i32
    %c0_i32_0 = arith.constant 0 : i32
    return %arg0, %c0_i32 : i32, i32
  }
}

</mosaic_0001>

<llo_original>
// kernel: tpu_custom_call.1
$region0: #{tpu_custom_call.1}
  #allocation0 [shape = 'u32[]', space=smem, size = 0x4, offset = 0x4, fixed_abs, tag = 'smem constant byte address 0x4 - core index']
  #allocation1 [shape = 'u32[144,128]{1,0:T(1,128)}', space=vmem, size = 0x12000, scoped, tag = 'internal scratch']
  %s0 = inlined_call_operand.hbm [shape: f32[8,32], index: 0, kind: input, shape index: {}]
  %s1 = inlined_call_operand.hbm [shape: bf16[32,1024], index: 1, kind: input, shape index: {}]
  %s2 = inlined_call_operand.hbm [shape: f32[3,1024], index: 2, kind: input, shape index: {}]
  %s3 = inlined_call_operand.hbm [shape: bf16[1024,128], index: 3, kind: input, shape index: {}]
  %s4 = inlined_call_operand.vmem [shape: f32[3,128], index: 4, kind: input, shape index: {}]
  %s5 = inlined_call_operand.hbm [shape: bf16[128,128], index: 5, kind: input, shape index: {}]
  %s6 = inlined_call_operand.vmem [shape: f32[1,128], index: 6, kind: input, shape index: {}]
  %s7 = inlined_call_operand.hbm [shape: f32[8,128], index: 7, kind: output, shape index: {}]
  %s8 = sld [smem:[#allocation0]]
  $region58: #{tpu_custom_call.1} parent=0
    _
  %s10 = ssub.s32 1, %s8
  %s11 = scalar_select 0, %s10, %s8
  $region1: #{tpu_custom_call.1} parent=0
    #allocation2 [shape = 'u8[4096]{0}', space=vmem, size = 0x1000, scoped, tag = 'input window, operand 0, single buffered']
    #allocation3 [shape = 's32[1]{0}', space=sflag, size = 0x4, scoped, tag = 'scoped memory for tpu_custom_call.1']
    #allocation4 [shape = 's32[1]{0}', space=sflag, size = 0x4, scoped, tag = 'scoped memory for tpu_custom_call.1']
    #allocation5 [shape = 'u8[65536]{0}', space=vmem, size = 0x10000, scoped, tag = 'input window, operand 1, single buffered']
    #allocation6 [shape = 's32[1]{0}', space=sflag, size = 0x4, scoped, tag = 'scoped memory for tpu_custom_call.1']
    #allocation7 [shape = 'u8[16384]{0}', space=vmem, size = 0x4000, scoped, tag = 'input window, operand 2, single buffered']
    #allocation8 [shape = 'u8[262144]{0}', space=vmem, size = 0x40000, scoped, tag = 'input window, operand 3, single buffered']
    #allocation9 [shape = 's32[1]{0}', space=sflag, size = 0x4, scoped, tag = 'scoped memory for tpu_custom_call.1']
    #allocation10 [shape = 'u8[32768]{0}', space=vmem, size = 0x8000, scoped, tag = 'input window, operand 5, single buffered']
    #allocation11 [shape = 'u8[4096]{0}', space=vmem, size = 0x1000, scoped, tag = 'output window, operand 0, single buffered']
    %12 = vsyncpa [#allocation3], 0
    %13 = vsyncpa [#allocation6], 0
    %14 = vsyncpa [#allocation9], 0
    %15 = vsyncpa [#allocation4], 0
    // Predicated region
    $region2: #{tpu_custom_call.1} parent=1 // pred_check
      _
    $region3: #{tpu_custom_call.1} parent=1 // pred_check_branch
      %17 = sbr.rel (0) target = $region5
    $region4: #{tpu_custom_call.1} parent=1 // pred_region
      %s19 = ssub.s32 128, 128
      %20 = vsyncadd [#allocation3], %s19
      %s22 = sshll.u32 [#allocation2], 4
      %s23 = int_to_ptr.vmem [resolvable:$true] %s22
      %25 = dma.hbm_to_vmem [thread:$0]  %s0, 128, %s23, [#allocation3]
    $region5: #{tpu_custom_call.1} parent=1 // pred_fallthru
      _
    // Predicated region
    $region6: #{tpu_custom_call.1} parent=1 // pred_check
      _
    $region7: #{tpu_custom_call.1} parent=1 // pred_check_branch
      %27 = sbr.rel (0) target = $region9
    $region8: #{tpu_custom_call.1} parent=1 // pred_region
      %s29 = ssub.s32 2048, 2048
      %30 = vsyncadd [#allocation6], %s29
      %s31 = sshll.u32 [#allocation5], 4
      %s32 = int_to_ptr.vmem [resolvable:$true] %s31
      %37 = dma.hbm_to_vmem [thread:$0]  %s1, 2048, %s32, [#allocation6], 512, 512, 32
    $region9: #{tpu_custom_call.1} parent=1 // pred_fallthru
      _
    // Predicated region
    $region10: #{tpu_custom_call.1} parent=1 // pred_check
      _
    $region11: #{tpu_custom_call.1} parent=1 // pred_check_branch
      %39 = sbr.rel (0) target = $region13
    $region12: #{tpu_custom_call.1} parent=1 // pred_region
      %s41 = ssub.s32 512, 512
      %42 = vsyncadd [#allocation6], %s41
      %s44 = sshll.u32 [#allocation7], 4
      %s45 = int_to_ptr.vmem [resolvable:$true] %s44
      %47 = dma.hbm_to_vmem [thread:$0]  %s2, 512, %s45, [#allocation6]
    $region13: #{tpu_custom_call.1} parent=1 // pred_fallthru
      _
    // Predicated region
    $region14: #{tpu_custom_call.1} parent=1 // pred_check
      _
    $region15: #{tpu_custom_call.1} parent=1 // pred_check_branch
      %49 = sbr.rel (0) target = $region17
    $region16: #{tpu_custom_call.1} parent=1 // pred_region
      %s51 = ssub.s32 8192, 8192
      %52 = vsyncadd [#allocation9], %s51
      %s53 = sshll.u32 [#allocation8], 4
      %s54 = int_to_ptr.vmem [resolvable:$true] %s53
      %59 = dma.hbm_to_vmem [thread:$0]  %s3, 8192, %s54, [#allocation9], 64, 64, 4
    $region17: #{tpu_custom_call.1} parent=1 // pred_fallthru
      _
    // Predicated region
    $region18: #{tpu_custom_call.1} parent=1 // pred_check
      _
    $region19: #{tpu_custom_call.1} parent=1 // pred_check_branch
      %61 = sbr.rel (0) target = $region21
    $region20: #{tpu_custom_call.1} parent=1 // pred_region
      _
    $region21: #{tpu_custom_call.1} parent=1 // pred_fallthru
      _
    // Predicated region
    $region22: #{tpu_custom_call.1} parent=1 // pred_check
      _
    $region23: #{tpu_custom_call.1} parent=1 // pred_check_branch
      %63 = sbr.rel (0) target = $region25
    $region24: #{tpu_custom_call.1} parent=1 // pred_region
      %s65 = ssub.s32 1024, 1024
      %66 = vsyncadd [#allocation9], %s65
      %s67 = sshll.u32 [#allocation10], 4
      %s68 = int_to_ptr.vmem [resolvable:$true] %s67
      %73 = dma.hbm_to_vmem [thread:$0]  %s5, 1024, %s68, [#allocation9], 64, 64, 4
    $region25: #{tpu_custom_call.1} parent=1 // pred_fallthru
      _
    // Predicated region
    $region26: #{tpu_custom_call.1} parent=1 // pred_check
      _
    $region27: #{tpu_custom_call.1} parent=1 // pred_check_branch
      %75 = sbr.rel (0) target = $region29
    $region28: #{tpu_custom_call.1} parent=1 // pred_region
      _
    $region29: #{tpu_custom_call.1} parent=1 // pred_fallthru
      _
    // Predicated region
    $region30: #{tpu_custom_call.1} parent=1 // pred_check
      _
    $region31: #{tpu_custom_call.1} parent=1 // pred_check_branch
      %77 = sbr.rel (0) target = $region33
    $region32: #{tpu_custom_call.1} parent=1 // pred_region
      %78 = dma.done [#allocation3], 128
    $region33: #{tpu_custom_call.1} parent=1 // pred_fallthru
      _
    // Predicated region
    $region34: #{tpu_custom_call.1} parent=1 // pred_check
      _
    $region35: #{tpu_custom_call.1} parent=1 // pred_check_branch
      %80 = sbr.rel (0) target = $region37
    $region36: #{tpu_custom_call.1} parent=1 // pred_region
      %81 = dma.done [#allocation6], 2048
    $region37: #{tpu_custom_call.1} parent=1 // pred_fallthru
      _
    // Predicated region
    $region38: #{tpu_custom_call.1} parent=1 // pred_check
      _
    $region39: #{tpu_custom_call.1} parent=1 // pred_check_branch
      %83 = sbr.rel (0) target = $region41
    $region40: #{tpu_custom_call.1} parent=1 // pred_region
      %84 = dma.done [#allocation6], 512
    $region41: #{tpu_custom_call.1} parent=1 // pred_fallthru
      _
    // Predicated region
    $region42: #{tpu_custom_call.1} parent=1 // pred_check
      _
    $region43: #{tpu_custom_call.1} parent=1 // pred_check_branch
      %86 = sbr.rel (0) target = $region45
    $region44: #{tpu_custom_call.1} parent=1 // pred_region
      %87 = dma.done [#allocation9], 8192
    $region45: #{tpu_custom_call.1} parent=1 // pred_fallthru
      _
    // Predicated region
    $region46: #{tpu_custom_call.1} parent=1 // pred_check
      _
    $region47: #{tpu_custom_call.1} parent=1 // pred_check_branch
      %89 = sbr.rel (0) target = $region49
    $region48: #{tpu_custom_call.1} parent=1 // pred_region
      %90 = dma.done [#allocation9], 1024
    $region49: #{tpu_custom_call.1} parent=1 // pred_fallthru
      _
    %v92 = vld [vmem:[#allocation2] sm:$0xff]
    %v93 = vpack.c.bf16 %v92, %v92
    %v94 = vld [vmem:[#allocation5] sm:$0xff]
    %v95 = vld [vmem:[#allocation5 + $0x8] sm:$0xff]
    %v96 = vld [vmem:[#allocation5 + $0x10] sm:$0xff]
    %v97 = vld [vmem:[#allocation5 + $0x18] sm:$0xff]
    %v98 = vld [vmem:[#allocation5 + $0x20] sm:$0xff]
    %v99 = vld [vmem:[#allocation5 + $0x28] sm:$0xff]
    %v100 = vld [vmem:[#allocation5 + $0x30] sm:$0xff]
    %v101 = vld [vmem:[#allocation5 + $0x38] sm:$0xff]
    %v102 = vld [vmem:[#allocation5 + $0x40] sm:$0xff]
    %v103 = vld [vmem:[#allocation5 + $0x48] sm:$0xff]
    %v104 = vld [vmem:[#allocation5 + $0x50] sm:$0xff]
    %v105 = vld [vmem:[#allocation5 + $0x58] sm:$0xff]
    %v106 = vld [vmem:[#allocation5 + $0x60] sm:$0xff]
    %v107 = vld [vmem:[#allocation5 + $0x68] sm:$0xff]
    %v108 = vld [vmem:[#allocation5 + $0x70] sm:$0xff]
    %v109 = vld [vmem:[#allocation5 + $0x78] sm:$0xff]
    %v110 = vld [vmem:[#allocation7] sm:$0x77]
    %v111 = vld [vmem:[#allocation7 + $0x8] sm:$0x77]
    %v112 = vld [vmem:[#allocation7 + $0x10] sm:$0x77]
    %v113 = vld [vmem:[#allocation7 + $0x18] sm:$0x77]
    %v118 = vlaneseq
    %v119 = vshrl.u32 %v118, 7
    %v120 = vsub.s32 0, %v119
    %v121 = vrot.slane %v110, %v120
    %v122 = vlaneseq
    %v123 = vshrl.u32 %v122, 7
    %v124 = vsub.s32 4, %v123
    %v125 = vrot.slane %v110, %v124
    %v126 = vlaneseq
    %v127 = vshrl.u32 %v126, 7
    %v128 = vsub.s32 0, %v127
    %v129 = vrot.slane %v111, %v128
    %v130 = vlaneseq
    %v131 = vshrl.u32 %v130, 7
    %v132 = vsub.s32 4, %v131
    %v133 = vrot.slane %v111, %v132
    %v134 = vlaneseq
    %v135 = vshrl.u32 %v134, 7
    %v136 = vsub.s32 0, %v135
    %v137 = vrot.slane %v112, %v136
    %v138 = vlaneseq
    %v139 = vshrl.u32 %v138, 7
    %v140 = vsub.s32 4, %v139
    %v141 = vrot.slane %v112, %v140
    %v142 = vlaneseq
    %v143 = vshrl.u32 %v142, 7
    %v144 = vsub.s32 0, %v143
    %v145 = vrot.slane %v113, %v144
    %v146 = vlaneseq
    %v147 = vshrl.u32 %v146, 7
    %v148 = vsub.s32 4, %v147
    %v149 = vrot.slane %v113, %v148
    %v158 = vlaneseq
    %v159 = vshrl.u32 %v158, 7
    %v160 = vsub.s32 0, %v159
    %v161 = vrot.slane %v121, %v160
    %v162 = vlaneseq
    %v163 = vshrl.u32 %v162, 7
    %v164 = vsub.s32 0, %v163
    %v165 = vrot.slane %v125, %v164
    %v166 = vlaneseq
    %v167 = vshrl.u32 %v166, 7
    %v168 = vsub.s32 0, %v167
    %v169 = vrot.slane %v129, %v168
    %v170 = vlaneseq
    %v171 = vshrl.u32 %v170, 7
    %v172 = vsub.s32 0, %v171
    %v173 = vrot.slane %v133, %v172
    %v174 = vlaneseq
    %v175 = vshrl.u32 %v174, 7
    %v176 = vsub.s32 0, %v175
    %v177 = vrot.slane %v137, %v176
    %v178 = vlaneseq
    %v179 = vshrl.u32 %v178, 7
    %v180 = vsub.s32 0, %v179
    %v181 = vrot.slane %v141, %v180
    %v182 = vlaneseq
    %v183 = vshrl.u32 %v182, 7
    %v184 = vsub.s32 0, %v183
    %v185 = vrot.slane %v145, %v184
    %v186 = vlaneseq
    %v187 = vshrl.u32 %v186, 7
    %v188 = vsub.s32 0, %v187
    %v189 = vrot.slane %v149, %v188
    %v206 = vunpack.c.l.b16 %v94
    %v207 = vunpack.c.h.b16 %v94
    %v208 = vunpack.c.l.b16 %v95
    %v209 = vunpack.c.h.b16 %v95
    %v210 = vunpack.c.l.b16 %v96
    %v211 = vunpack.c.h.b16 %v96
    %v212 = vunpack.c.l.b16 %v97
    %v213 = vunpack.c.h.b16 %v97
    %v214 = vunpack.c.l.b16 %v98
    %v215 = vunpack.c.h.b16 %v98
    %v216 = vunpack.c.l.b16 %v99
    %v217 = vunpack.c.h.b16 %v99
    %v218 = vunpack.c.l.b16 %v100
    %v219 = vunpack.c.h.b16 %v100
    %v220 = vunpack.c.l.b16 %v101
    %v221 = vunpack.c.h.b16 %v101
    %v222 = vunpack.c.l.b16 %v102
    %v223 = vunpack.c.h.b16 %v102
    %v224 = vunpack.c.l.b16 %v103
    %v225 = vunpack.c.h.b16 %v103
    %v226 = vunpack.c.l.b16 %v104
    %v227 = vunpack.c.h.b16 %v104
    %v228 = vunpack.c.l.b16 %v105
    %v229 = vunpack.c.h.b16 %v105
    %v230 = vunpack.c.l.b16 %v106
    %v231 = vunpack.c.h.b16 %v106
    %v232 = vunpack.c.l.b16 %v107
    %v233 = vunpack.c.h.b16 %v107
    %v234 = vunpack.c.l.b16 %v108
    %v235 = vunpack.c.h.b16 %v108
    %v236 = vunpack.c.l.b16 %v109
    %v237 = vunpack.c.h.b16 %v109
    %v238 = vpack.c.b16 %v214, %v206
    %v239 = vpack.c.b16 %v215, %v207
    %v240 = vpack.c.b16 %v216, %v208
    %v241 = vpack.c.b16 %v217, %v209
    %v242 = vpack.c.b16 %v218, %v210
    %v243 = vpack.c.b16 %v219, %v211
    %v244 = vpack.c.b16 %v220, %v212
    %v245 = vpack.c.b16 %v221, %v213
    %v246 = vpack.c.b16 %v230, %v222
    %v247 = vpack.c.b16 %v231, %v223
    %v248 = vpack.c.b16 %v232, %v224
    %v249 = vpack.c.b16 %v233, %v225
    %v250 = vpack.c.b16 %v234, %v226
    %v251 = vpack.c.b16 %v235, %v227
    %v252 = vpack.c.b16 %v236, %v228
    %v253 = vpack.c.b16 %v237, %v229
    %vm270 = vcmask 261120
    %v272 = vsel %vm270, %v93, 0
    %274 = vmatprep.subr.bf16.mxu0 %v239
    %275 = vmatpush1.bf16.msra.mxu0 %v238
    %276 = vmatprep.subr.bf16.mxu0 %v247
    %277 = vmatpush1.bf16.msra.mxu0 %v246
    %278 = vmatprep.subr.bf16.mxu0 0
    %279 = vmatpush1.bf16.msra.mxu0 0
    %280 = vmatprep.subr.bf16.mxu0 0
    %281 = vmatpush1.bf16.msra.mxu0 0
    %282 = vmatprep.subr.bf16.mxu0 0
    %283 = vmatpush1.bf16.msra.mxu0 0
    %284 = vmatprep.subr.bf16.mxu0 0
    %285 = vmatpush1.bf16.msra.mxu0 0
    %286 = vmatprep.subr.bf16.mxu0 0
    %287 = vmatpush1.bf16.msra.mxu0 0
    %288 = vmatprep.subr.bf16.mxu0 0
    %289 = vmatpush1.bf16.msra.mxu0 0
    %290 = vmatprep.subr.bf16.mxu0 0
    %291 = vmatpush1.bf16.msra.mxu0 0
    %292 = vmatprep.subr.bf16.mxu0 0
    %293 = vmatpush1.bf16.msra.mxu0 0
    %294 = vmatprep.subr.bf16.mxu0 0
    %295 = vmatpush1.bf16.msra.mxu0 0
    %296 = vmatprep.subr.bf16.mxu0 0
    %297 = vmatpush1.bf16.msra.mxu0 0
    %298 = vmatprep.subr.bf16.mxu0 0
    %299 = vmatpush1.bf16.msra.mxu0 0
    %300 = vmatprep.subr.bf16.mxu0 0
    %301 = vmatpush1.bf16.msra.mxu0 0
    %302 = vmatprep.subr.bf16.mxu0 0
    %303 = vmatpush1.bf16.msra.mxu0 0
    %304 = vmatprep.subr.bf16.mxu0 0
    %305 = vmatpush1.bf16.msra.mxu0 0
    %306 = vmatprep.mubr.bf16.mxu0 0
    %307 = vmatmul.mubr.bf16.gmra.mrb[0].mxu0 %v272
    %v308 = vpop.f32.mrb[0].mxu0
    %v309 = vadd.f32 %v161, %v308
    %v310 = vpop.f32.mrb[0].mxu0
    %v311 = vadd.f32 %v165, %v310
    %v312 = vpop.f32.mrb[0].mxu0
    %v313 = vpop.f32.mrb[0].mxu0
    %314 = vdwg.mxu0
    %315 = vmatprep.subr.bf16.mxu0 %v241
    %316 = vmatpush1.bf16.msra.mxu0 %v240
    %317 = vmatprep.subr.bf16.mxu0 %v249
    %318 = vmatpush1.bf16.msra.mxu0 %v248
    %319 = vmatprep.subr.bf16.mxu0 0
    %320 = vmatpush1.bf16.msra.mxu0 0
    %321 = vmatprep.subr.bf16.mxu0 0
    %322 = vmatpush1.bf16.msra.mxu0 0
    %323 = vmatprep.subr.bf16.mxu0 0
    %324 = vmatpush1.bf16.msra.mxu0 0
    %325 = vmatprep.subr.bf16.mxu0 0
    %326 = vmatpush1.bf16.msra.mxu0 0
    %327 = vmatprep.subr.bf16.mxu0 0
    %328 = vmatpush1.bf16.msra.mxu0 0
    %329 = vmatprep.subr.bf16.mxu0 0
    %330 = vmatpush1.bf16.msra.mxu0 0
    %331 = vmatprep.subr.bf16.mxu0 0
    %332 = vmatpush1.bf16.msra.mxu0 0
    %333 = vmatprep.subr.bf16.mxu0 0
    %334 = vmatpush1.bf16.msra.mxu0 0
    %335 = vmatprep.subr.bf16.mxu0 0
    %336 = vmatpush1.bf16.msra.mxu0 0
    %337 = vmatprep.subr.bf16.mxu0 0
    %338 = vmatpush1.bf16.msra.mxu0 0
    %339 = vmatprep.subr.bf16.mxu0 0
    %340 = vmatpush1.bf16.msra.mxu0 0
    %341 = vmatprep.subr.bf16.mxu0 0
    %342 = vmatpush1.bf16.msra.mxu0 0
    %343 = vmatprep.subr.bf16.mxu0 0
    %344 = vmatpush1.bf16.msra.mxu0 0
    %345 = vmatprep.subr.bf16.mxu0 0
    %346 = vmatpush1.bf16.msra.mxu0 0
    %347 = vmatprep.mubr.bf16.mxu0 0
    %348 = vmatmul.mubr.bf16.gmra.mrb[0].mxu0 %v272
    %v349 = vpop.f32.mrb[0].mxu0
    %v350 = vadd.f32 %v169, %v349
    %v351 = vpop.f32.mrb[0].mxu0
    %v352 = vadd.f32 %v173, %v351
    %v353 = vpop.f32.mrb[0].mxu0
    %v354 = vpop.f32.mrb[0].mxu0
    %355 = vdwg.mxu0
    %356 = vmatprep.subr.bf16.mxu0 %v243
    %357 = vmatpush1.bf16.msra.mxu0 %v242
    %358 = vmatprep.subr.bf16.mxu0 %v251
    %359 = vmatpush1.bf16.msra.mxu0 %v250
    %360 = vmatprep.subr.bf16.mxu0 0
    %361 = vmatpush1.bf16.msra.mxu0 0
    %362 = vmatprep.subr.bf16.mxu0 0
    %363 = vmatpush1.bf16.msra.mxu0 0
    %364 = vmatprep.subr.bf16.mxu0 0
    %365 = vmatpush1.bf16.msra.mxu0 0
    %366 = vmatprep.subr.bf16.mxu0 0
    %367 = vmatpush1.bf16.msra.mxu0 0
    %368 = vmatprep.subr.bf16.mxu0 0
    %369 = vmatpush1.bf16.msra.mxu0 0
    %370 = vmatprep.subr.bf16.mxu0 0
    %371 = vmatpush1.bf16.msra.mxu0 0
    %372 = vmatprep.subr.bf16.mxu0 0
    %373 = vmatpush1.bf16.msra.mxu0 0
    %374 = vmatprep.subr.bf16.mxu0 0
    %375 = vmatpush1.bf16.msra.mxu0 0
    %376 = vmatprep.subr.bf16.mxu0 0
    %377 = vmatpush1.bf16.msra.mxu0 0
    %378 = vmatprep.subr.bf16.mxu0 0
    %379 = vmatpush1.bf16.msra.mxu0 0
    %380 = vmatprep.subr.bf16.mxu0 0
    %381 = vmatpush1.bf16.msra.mxu0 0
    %382 = vmatprep.subr.bf16.mxu0 0
    %383 = vmatpush1.bf16.msra.mxu0 0
    %384 = vmatprep.subr.bf16.mxu0 0
    %385 = vmatpush1.bf16.msra.mxu0 0
    %386 = vmatprep.subr.bf16.mxu0 0
    %387 = vmatpush1.bf16.msra.mxu0 0
    %388 = vmatprep.mubr.bf16.mxu0 0
    %389 = vmatmul.mubr.bf16.gmra.mrb[0].mxu0 %v272
    %v390 = vpop.f32.mrb[0].mxu0
    %v391 = vadd.f32 %v177, %v390
    %v392 = vpop.f32.mrb[0].mxu0
    %v393 = vadd.f32 %v181, %v392
    %v394 = vpop.f32.mrb[0].mxu0
    %v395 = vpop.f32.mrb[0].mxu0
    %396 = vdwg.mxu0
    %397 = vmatprep.subr.bf16.mxu0 %v245
    %398 = vmatpush1.bf16.msra.mxu0 %v244
    %399 = vmatprep.subr.bf16.mxu0 %v253
    %400 = vmatpush1.bf16.msra.mxu0 %v252
    %401 = vmatprep.subr.bf16.mxu0 0
    %402 = vmatpush1.bf16.msra.mxu0 0
    %403 = vmatprep.subr.bf16.mxu0 0
    %404 = vmatpush1.bf16.msra.mxu0 0
    %405 = vmatprep.subr.bf16.mxu0 0
    %406 = vmatpush1.bf16.msra.mxu0 0
    %407 = vmatprep.subr.bf16.mxu0 0
    %408 = vmatpush1.bf16.msra.mxu0 0
    %409 = vmatprep.subr.bf16.mxu0 0
    %410 = vmatpush1.bf16.msra.mxu0 0
    %411 = vmatprep.subr.bf16.mxu0 0
    %412 = vmatpush1.bf16.msra.mxu0 0
    %413 = vmatprep.subr.bf16.mxu0 0
    %414 = vmatpush1.bf16.msra.mxu0 0
    %415 = vmatprep.subr.bf16.mxu0 0
    %416 = vmatpush1.bf16.msra.mxu0 0
    %417 = vmatprep.subr.bf16.mxu0 0
    %418 = vmatpush1.bf16.msra.mxu0 0
    %419 = vmatprep.subr.bf16.mxu0 0
    %420 = vmatpush1.bf16.msra.mxu0 0
    %421 = vmatprep.subr.bf16.mxu0 0
    %422 = vmatpush1.bf16.msra.mxu0 0
    %423 = vmatprep.subr.bf16.mxu0 0
    %424 = vmatpush1.bf16.msra.mxu0 0
    %425 = vmatprep.subr.bf16.mxu0 0
    %426 = vmatpush1.bf16.msra.mxu0 0
    %427 = vmatprep.subr.bf16.mxu0 0
    %428 = vmatpush1.bf16.msra.mxu0 0
    %429 = vmatprep.mubr.bf16.mxu0 0
    %430 = vmatmul.mubr.bf16.gmra.mrb[0].mxu0 %v272
    %v431 = vpop.f32.mrb[0].mxu0
    %v432 = vadd.f32 %v185, %v431
    %v433 = vpop.f32.mrb[0].mxu0
    %v434 = vadd.f32 %v189, %v433
    %v435 = vpop.f32.mrb[0].mxu0
    %v436 = vpop.f32.mrb[0].mxu0
    %437 = vdwg.mxu0
    %v438 = vadd.f32 %v309, %v311
    %v439 = vadd.f32 %v438, %v350
    %v440 = vadd.f32 %v439, %v352
    %v441 = vadd.f32 %v440, %v391
    %v442 = vadd.f32 %v441, %v393
    %v443 = vadd.f32 %v442, %v432
    %v444 = vadd.f32 %v443, %v434
    %445 = vadd.xlane.f32.xlu0 %v444
    %v446 = vpop.xlane.xlu0 %445
    %v447 = vmul.f32 %v309, %v309
    %v448 = vmul.f32 %v311, %v311
    %v449 = vmul.f32 %v350, %v350
    %v450 = vmul.f32 %v352, %v352
    %v451 = vmul.f32 %v391, %v391
    %v452 = vmul.f32 %v393, %v393
    %v453 = vmul.f32 %v432, %v432
    %v454 = vmul.f32 %v434, %v434
    %v455 = vadd.f32 %v447, %v448
    %v456 = vadd.f32 %v455, %v449
    %v457 = vadd.f32 %v456, %v450
    %v458 = vadd.f32 %v457, %v451
    %v459 = vadd.f32 %v458, %v452
    %v460 = vadd.f32 %v459, %v453
    %v461 = vadd.f32 %v460, %v454
    %462 = vadd.xlane.f32.xlu0 %v461
    %v463 = vpop.xlane.xlu0 %462
    %v464 = vmul.f32 %v446, 0.0009765625
    %v465 = vmul.f32 %v463, 0.0009765625
    %v466 = vmul.f32 %v464, %v464
    %v467 = vsub.f32 %v465, %v466
    %v468 = vsub.f32 %v309, %v464
    %v469 = vsub.f32 %v311, %v464
    %v470 = vsub.f32 %v350, %v464
    %v471 = vsub.f32 %v352, %v464
    %v472 = vsub.f32 %v391, %v464
    %v473 = vsub.f32 %v393, %v464
    %v474 = vsub.f32 %v432, %v464
    %v475 = vsub.f32 %v434, %v464
    %v476 = vadd.f32 %v467, 1e-05
    %v477 = vrsqrt.pop %v476
    %v478 = vmul.f32 %v468, %v477
    %v479 = vmul.f32 %v469, %v477
    %v480 = vmul.f32 %v470, %v477
    %v481 = vmul.f32 %v471, %v477
    %v482 = vmul.f32 %v472, %v477
    %v483 = vmul.f32 %v473, %v477
    %v484 = vmul.f32 %v474, %v477
    %v485 = vmul.f32 %v475, %v477
    %v486 = vlaneseq
    %v487 = vshrl.u32 %v486, 7
    %v488 = vsub.s32 1, %v487
    %v489 = vrot.slane %v110, %v488
    %v490 = vlaneseq
    %v491 = vshrl.u32 %v490, 7
    %v492 = vsub.s32 5, %v491
    %v493 = vrot.slane %v110, %v492
    %v494 = vlaneseq
    %v495 = vshrl.u32 %v494, 7
    %v496 = vsub.s32 1, %v495
    %v497 = vrot.slane %v111, %v496
    %v498 = vlaneseq
    %v499 = vshrl.u32 %v498, 7
    %v500 = vsub.s32 5, %v499
    %v501 = vrot.slane %v111, %v500
    %v502 = vlaneseq
    %v503 = vshrl.u32 %v502, 7
    %v504 = vsub.s32 1, %v503
    %v505 = vrot.slane %v112, %v504
    %v506 = vlaneseq
    %v507 = vshrl.u32 %v506, 7
    %v508 = vsub.s32 5, %v507
    %v509 = vrot.slane %v112, %v508
    %v510 = vlaneseq
    %v511 = vshrl.u32 %v510, 7
    %v512 = vsub.s32 1, %v511
    %v513 = vrot.slane %v113, %v512
    %v514 = vlaneseq
    %v515 = vshrl.u32 %v514, 7
    %v516 = vsub.s32 5, %v515
    %v517 = vrot.slane %v113, %v516
    %v526 = vlaneseq
    %v527 = vshrl.u32 %v526, 7
    %v528 = vsub.s32 1, %v527
    %v529 = vrot.slane %v489, %v528
    %v530 = vlaneseq
    %v531 = vshrl.u32 %v530, 7
    %v532 = vsub.s32 1, %v531
    %v533 = vrot.slane %v493, %v532
    %v534 = vlaneseq
    %v535 = vshrl.u32 %v534, 7
    %v536 = vsub.s32 1, %v535
    %v537 = vrot.slane %v497, %v536
    %v538 = vlaneseq
    %v539 = vshrl.u32 %v538, 7
    %v540 = vsub.s32 1, %v539
    %v541 = vrot.slane %v501, %v540
    %v542 = vlaneseq
    %v543 = vshrl.u32 %v542, 7
    %v544 = vsub.s32 1, %v543
    %v545 = vrot.slane %v505, %v544
    %v546 = vlaneseq
    %v547 = vshrl.u32 %v546, 7
    %v548 = vsub.s32 1, %v547
    %v549 = vrot.slane %v509, %v548
    %v550 = vlaneseq
    %v551 = vshrl.u32 %v550, 7
    %v552 = vsub.s32 1, %v551
    %v553 = vrot.slane %v513, %v552
    %v554 = vlaneseq
    %v555 = vshrl.u32 %v554, 7
    %v556 = vsub.s32 1, %v555
    %v557 = vrot.slane %v517, %v556
    %v558 = vmul.f32 %v478, %v529
    %v559 = vmul.f32 %v479, %v533
    %v560 = vmul.f32 %v480, %v537
    %v561 = vmul.f32 %v481, %v541
    %v562 = vmul.f32 %v482, %v545
    %v563 = vmul.f32 %v483, %v549
    %v564 = vmul.f32 %v484, %v553
    %v565 = vmul.f32 %v485, %v557
    %v566 = vlaneseq
    %v567 = vshrl.u32 %v566, 7
    %v568 = vsub.s32 2, %v567
    %v569 = vrot.slane %v110, %v568
    %v570 = vlaneseq
    %v571 = vshrl.u32 %v570, 7
    %v572 = vsub.s32 6, %v571
    %v573 = vrot.slane %v110, %v572
    %v574 = vlaneseq
    %v575 = vshrl.u32 %v574, 7
    %v576 = vsub.s32 2, %v575
    %v577 = vrot.slane %v111, %v576
    %v578 = vlaneseq
    %v579 = vshrl.u32 %v578, 7
    %v580 = vsub.s32 6, %v579
    %v581 = vrot.slane %v111, %v580
    %v582 = vlaneseq
    %v583 = vshrl.u32 %v582, 7
    %v584 = vsub.s32 2, %v583
    %v585 = vrot.slane %v112, %v584
    %v586 = vlaneseq
    %v587 = vshrl.u32 %v586, 7
    %v588 = vsub.s32 6, %v587
    %v589 = vrot.slane %v112, %v588
    %v590 = vlaneseq
    %v591 = vshrl.u32 %v590, 7
    %v592 = vsub.s32 2, %v591
    %v593 = vrot.slane %v113, %v592
    %v594 = vlaneseq
    %v595 = vshrl.u32 %v594, 7
    %v596 = vsub.s32 6, %v595
    %v597 = vrot.slane %v113, %v596
    %v606 = vlaneseq
    %v607 = vshrl.u32 %v606, 7
    %v608 = vsub.s32 2, %v607
    %v609 = vrot.slane %v569, %v608
    %v610 = vlaneseq
    %v611 = vshrl.u32 %v610, 7
    %v612 = vsub.s32 2, %v611
    %v613 = vrot.slane %v573, %v612
    %v614 = vlaneseq
    %v615 = vshrl.u32 %v614, 7
    %v616 = vsub.s32 2, %v615
    %v617 = vrot.slane %v577, %v616
    %v618 = vlaneseq
    %v619 = vshrl.u32 %v618, 7
    %v620 = vsub.s32 2, %v619
    %v621 = vrot.slane %v581, %v620
    %v622 = vlaneseq
    %v623 = vshrl.u32 %v622, 7
    %v624 = vsub.s32 2, %v623
    %v625 = vrot.slane %v585, %v624
    %v626 = vlaneseq
    %v627 = vshrl.u32 %v626, 7
    %v628 = vsub.s32 2, %v627
    %v629 = vrot.slane %v589, %v628
    %v630 = vlaneseq
    %v631 = vshrl.u32 %v630, 7
    %v632 = vsub.s32 2, %v631
    %v633 = vrot.slane %v593, %v632
    %v634 = vlaneseq
    %v635 = vshrl.u32 %v634, 7
    %v636 = vsub.s32 2, %v635
    %v637 = vrot.slane %v597, %v636
    %v638 = vadd.f32 %v558, %v609
    %v639 = vadd.f32 %v559, %v613
    %v640 = vadd.f32 %v560, %v617
    %v641 = vadd.f32 %v561, %v621
    %v642 = vadd.f32 %v562, %v625
    %v643 = vadd.f32 %v563, %v629
    %v644 = vadd.f32 %v564, %v633
    %v645 = vadd.f32 %v565, %v637
    %v646 = vtanh.pop %v638
    %v647 = vtanh.pop %v639
    %v648 = vtanh.pop %v640
    %v649 = vtanh.pop %v641
    %v650 = vtanh.pop %v642
    %v651 = vtanh.pop %v643
    %v652 = vtanh.pop %v644
    %v653 = vtanh.pop %v645
    %v654 = vpack.c.bf16 %v646, %v646
    %v655 = vpack.c.bf16 %v647, %v647
    %v656 = vpack.c.bf16 %v648, %v648
    %v657 = vpack.c.bf16 %v649, %v649
    %v658 = vpack.c.bf16 %v650, %v650
    %v659 = vpack.c.bf16 %v651, %v651
    %v660 = vpack.c.bf16 %v652, %v652
    %v661 = vpack.c.bf16 %v653, %v653
    %v662 = vld [vmem:[#allocation8] sm:$0xf]
    %v663 = vld [vmem:[#allocation8 + $0x4] sm:$0xf]
    %v664 = vld [vmem:[#allocation8 + $0x8] sm:$0xf]
    %v665 = vld [vmem:[#allocation8 + $0xc] sm:$0xf]
    %v666 = vld [vmem:[#allocation8 + $0x10] sm:$0xf]
    %v667 = vld [vmem:[#allocation8 + $0x14] sm:$0xf]
    %v668 = vld [vmem:[#allocation8 + $0x18] sm:$0xf]
    %v669 = vld [vmem:[#allocation8 + $0x1c] sm:$0xf]
    %v670 = vld [vmem:[#allocation8 + $0x20] sm:$0xf]
    %v671 = vld [vmem:[#allocation8 + $0x24] sm:$0xf]
    %v672 = vld [vmem:[#allocation8 + $0x28] sm:$0xf]
    %v673 = vld [vmem:[#allocation8 + $0x2c] sm:$0xf]
    %v674 = vld [vmem:[#allocation8 + $0x30] sm:$0xf]
    %v675 = vld [vmem:[#allocation8 + $0x34] sm:$0xf]
    %v676 = vld [vmem:[#allocation8 + $0x38] sm:$0xf]
    %v677 = vld [vmem:[#allocation8 + $0x3c] sm:$0xf]
    %v678 = vld [vmem:[#allocation8 + $0x40] sm:$0xf]
    %v679 = vld [vmem:[#allocation8 + $0x44] sm:$0xf]
    %v680 = vld [vmem:[#allocation8 + $0x48] sm:$0xf]
    %v681 = vld [vmem:[#allocation8 + $0x4c] sm:$0xf]
    %v682 = vld [vmem:[#allocation8 + $0x50] sm:$0xf]
    %v683 = vld [vmem:[#allocation8 + $0x54] sm:$0xf]
    %v684 = vld [vmem:[#allocation8 + $0x58] sm:$0xf]
    %v685 = vld [vmem:[#allocation8 + $0x5c] sm:$0xf]
    %v686 = vld [vmem:[#allocation8 + $0x60] sm:$0xf]
    %v687 = vld [vmem:[#allocation8 + $0x64] sm:$0xf]
    %v688 = vld [vmem:[#allocation8 + $0x68] sm:$0xf]
    %v689 = vld [vmem:[#allocation8 + $0x6c] sm:$0xf]
    %v690 = vld [vmem:[#allocation8 + $0x70] sm:$0xf]
    %v691 = vld [vmem:[#allocation8 + $0x74] sm:$0xf]
    %v692 = vld [vmem:[#allocation8 + $0x78] sm:$0xf]
    %v693 = vld [vmem:[#allocation8 + $0x7c] sm:$0xf]
    %v694 = vld [vmem:[#allocation8 + $0x80] sm:$0xf]
    %v695 = vld [vmem:[#allocation8 + $0x84] sm:$0xf]
    %v696 = vld [vmem:[#allocation8 + $0x88] sm:$0xf]
    %v697 = vld [vmem:[#allocation8 + $0x8c] sm:$0xf]
    %v698 = vld [vmem:[#allocation8 + $0x90] sm:$0xf]
    %v699 = vld [vmem:[#allocation8 + $0x94] sm:$0xf]
    %v700 = vld [vmem:[#allocation8 + $0x98] sm:$0xf]
    %v701 = vld [vmem:[#allocation8 + $0x9c] sm:$0xf]
    %v702 = vld [vmem:[#allocation8 + $0xa0] sm:$0xf]
    %v703 = vld [vmem:[#allocation8 + $0xa4] sm:$0xf]
    %v704 = vld [vmem:[#allocation8 + $0xa8] sm:$0xf]
    %v705 = vld [vmem:[#allocation8 + $0xac] sm:$0xf]
    %v706 = vld [vmem:[#allocation8 + $0xb0] sm:$0xf]
    %v707 = vld [vmem:[#allocation8 + $0xb4] sm:$0xf]
    %v708 = vld [vmem:[#allocation8 + $0xb8] sm:$0xf]
    %v709 = vld [vmem:[#allocation8 + $0xbc] sm:$0xf]
    %v710 = vld [vmem:[#allocation8 + $0xc0] sm:$0xf]
    %v711 = vld [vmem:[#allocation8 + $0xc4] sm:$0xf]
    %v712 = vld [vmem:[#allocation8 + $0xc8] sm:$0xf]
    %v713 = vld [vmem:[#allocation8 + $0xcc] sm:$0xf]
    %v714 = vld [vmem:[#allocation8 + $0xd0] sm:$0xf]
    %v715 = vld [vmem:[#allocation8 + $0xd4] sm:$0xf]
    %v716 = vld [vmem:[#allocation8 + $0xd8] sm:$0xf]
    %v717 = vld [vmem:[#allocation8 + $0xdc] sm:$0xf]
    %v718 = vld [vmem:[#allocation8 + $0xe0] sm:$0xf]
    %v719 = vld [vmem:[#allocation8 + $0xe4] sm:$0xf]
    %v720 = vld [vmem:[#allocation8 + $0xe8] sm:$0xf]
    %v721 = vld [vmem:[#allocation8 + $0xec] sm:$0xf]
    %v722 = vld [vmem:[#allocation8 + $0xf0] sm:$0xf]
    %v723 = vld [vmem:[#allocation8 + $0xf4] sm:$0xf]
    %v724 = vld [vmem:[#allocation8 + $0xf8] sm:$0xf]
    %v725 = vld [vmem:[#allocation8 + $0xfc] sm:$0xf]
    %v726 = vld [vmem:[#allocation8 + $0x100] sm:$0xf]
    %v727 = vld [vmem:[#allocation8 + $0x104] sm:$0xf]
    %v728 = vld [vmem:[#allocation8 + $0x108] sm:$0xf]
    %v729 = vld [vmem:[#allocation8 + $0x10c] sm:$0xf]
    %v730 = vld [vmem:[#allocation8 + $0x110] sm:$0xf]
    %v731 = vld [vmem:[#allocation8 + $0x114] sm:$0xf]
    %v732 = vld [vmem:[#allocation8 + $0x118] sm:$0xf]
    %v733 = vld [vmem:[#allocation8 + $0x11c] sm:$0xf]
    %v734 = vld [vmem:[#allocation8 + $0x120] sm:$0xf]
    %v735 = vld [vmem:[#allocation8 + $0x124] sm:$0xf]
    %v736 = vld [vmem:[#allocation8 + $0x128] sm:$0xf]
    %v737 = vld [vmem:[#allocation8 + $0x12c] sm:$0xf]
    %v738 = vld [vmem:[#allocation8 + $0x130] sm:$0xf]
    %v739 = vld [vmem:[#allocation8 + $0x134] sm:$0xf]
    %v740 = vld [vmem:[#allocation8 + $0x138] sm:$0xf]
    %v741 = vld [vmem:[#allocation8 + $0x13c] sm:$0xf]
    %v742 = vld [vmem:[#allocation8 + $0x140] sm:$0xf]
    %v743 = vld [vmem:[#allocation8 + $0x144] sm:$0xf]
    %v744 = vld [vmem:[#allocation8 + $0x148] sm:$0xf]
    %v745 = vld [vmem:[#allocation8 + $0x14c] sm:$0xf]
    %v746 = vld [vmem:[#allocation8 + $0x150] sm:$0xf]
    %v747 = vld [vmem:[#allocation8 + $0x154] sm:$0xf]
    %v748 = vld [vmem:[#allocation8 + $0x158] sm:$0xf]
    %v749 = vld [vmem:[#allocation8 + $0x15c] sm:$0xf]
    %v750 = vld [vmem:[#allocation8 + $0x160] sm:$0xf]
    %v751 = vld [vmem:[#allocation8 + $0x164] sm:$0xf]
    %v752 = vld [vmem:[#allocation8 + $0x168] sm:$0xf]
    %v753 = vld [vmem:[#allocation8 + $0x16c] sm:$0xf]
    %v754 = vld [vmem:[#allocation8 + $0x170] sm:$0xf]
    %v755 = vld [vmem:[#allocation8 + $0x174] sm:$0xf]
    %v756 = vld [vmem:[#allocation8 + $0x178] sm:$0xf]
    %v757 = vld [vmem:[#allocation8 + $0x17c] sm:$0xf]
    %v758 = vld [vmem:[#allocation8 + $0x180] sm:$0xf]
    %v759 = vld [vmem:[#allocation8 + $0x184] sm:$0xf]
    %v760 = vld [vmem:[#allocation8 + $0x188] sm:$0xf]
    %v761 = vld [vmem:[#allocation8 + $0x18c] sm:$0xf]
    %v762 = vld [vmem:[#allocation8 + $0x190] sm:$0xf]
    %v763 = vld [vmem:[#allocation8 + $0x194] sm:$0xf]
    %v764 = vld [vmem:[#allocation8 + $0x198] sm:$0xf]
    %v765 = vld [vmem:[#allocation8 + $0x19c] sm:$0xf]
    %v766 = vld [vmem:[#allocation8 + $0x1a0] sm:$0xf]
    %v767 = vld [vmem:[#allocation8 + $0x1a4] sm:$0xf]
    %v768 = vld [vmem:[#allocation8 + $0x1a8] sm:$0xf]
    %v769 = vld [vmem:[#allocation8 + $0x1ac] sm:$0xf]
    %v770 = vld [vmem:[#allocation8 + $0x1b0] sm:$0xf]
    %v771 = vld [vmem:[#allocation8 + $0x1b4] sm:$0xf]
    %v772 = vld [vmem:[#allocation8 + $0x1b8] sm:$0xf]
    %v773 = vld [vmem:[#allocation8 + $0x1bc] sm:$0xf]
    %v774 = vld [vmem:[#allocation8 + $0x1c0] sm:$0xf]
    %v775 = vld [vmem:[#allocation8 + $0x1c4] sm:$0xf]
    %v776 = vld [vmem:[#allocation8 + $0x1c8] sm:$0xf]
    %v777 = vld [vmem:[#allocation8 + $0x1cc] sm:$0xf]
    %v778 = vld [vmem:[#allocation8 + $0x1d0] sm:$0xf]
    %v779 = vld [vmem:[#allocation8 + $0x1d4] sm:$0xf]
    %v780 = vld [vmem:[#allocation8 + $0x1d8] sm:$0xf]
    %v781 = vld [vmem:[#allocation8 + $0x1dc] sm:$0xf]
    %v782 = vld [vmem:[#allocation8 + $0x1e0] sm:$0xf]
    %v783 = vld [vmem:[#allocation8 + $0x1e4] sm:$0xf]
    %v784 = vld [vmem:[#allocation8 + $0x1e8] sm:$0xf]
    %v785 = vld [vmem:[#allocation8 + $0x1ec] sm:$0xf]
    %v786 = vld [vmem:[#allocation8 + $0x1f0] sm:$0xf]
    %v787 = vld [vmem:[#allocation8 + $0x1f4] sm:$0xf]
    %v788 = vld [vmem:[#allocation8 + $0x1f8] sm:$0xf]
    %v789 = vld [vmem:[#allocation8 + $0x1fc] sm:$0xf]
    %v790 = vld [vmem:[%s4] sm:$0x7]
    %v791 = vlaneseq
    %v792 = vshrl.u32 %v791, 7
    %v793 = vsub.s32 0, %v792
    %v794 = vrot.slane %v790, %v793
    %v923 = vunpack.c.l.b16 %v662
    %v924 = vunpack.c.l.b16 %v663
    %v925 = vunpack.c.l.b16 %v664
    %v926 = vunpack.c.l.b16 %v665
    %v927 = vunpack.c.l.b16 %v666
    %v928 = vunpack.c.l.b16 %v667
    %v929 = vunpack.c.l.b16 %v668
    %v930 = vunpack.c.l.b16 %v669
    %v931 = vunpack.c.l.b16 %v670
    %v932 = vunpack.c.l.b16 %v671
    %v933 = vunpack.c.l.b16 %v672
    %v934 = vunpack.c.l.b16 %v673
    %v935 = vunpack.c.l.b16 %v674
    %v936 = vunpack.c.l.b16 %v675
    %v937 = vunpack.c.l.b16 %v676
    %v938 = vunpack.c.l.b16 %v677
    %v939 = vunpack.c.l.b16 %v678
    %v940 = vunpack.c.l.b16 %v679
    %v941 = vunpack.c.l.b16 %v680
    %v942 = vunpack.c.l.b16 %v681
    %v943 = vunpack.c.l.b16 %v682
    %v944 = vunpack.c.l.b16 %v683
    %v945 = vunpack.c.l.b16 %v684
    %v946 = vunpack.c.l.b16 %v685
    %v947 = vunpack.c.l.b16 %v686
    %v948 = vunpack.c.l.b16 %v687
    %v949 = vunpack.c.l.b16 %v688
    %v950 = vunpack.c.l.b16 %v689
    %v951 = vunpack.c.l.b16 %v690
    %v952 = vunpack.c.l.b16 %v691
    %v953 = vunpack.c.l.b16 %v692
    %v954 = vunpack.c.l.b16 %v693
    %v955 = vunpack.c.l.b16 %v694
    %v956 = vunpack.c.l.b16 %v695
    %v957 = vunpack.c.l.b16 %v696
    %v958 = vunpack.c.l.b16 %v697
    %v959 = vunpack.c.l.b16 %v698
    %v960 = vunpack.c.l.b16 %v699
    %v961 = vunpack.c.l.b16 %v700
    %v962 = vunpack.c.l.b16 %v701
    %v963 = vunpack.c.l.b16 %v702
    %v964 = vunpack.c.l.b16 %v703
    %v965 = vunpack.c.l.b16 %v704
    %v966 = vunpack.c.l.b16 %v705
    %v967 = vunpack.c.l.b16 %v706
    %v968 = vunpack.c.l.b16 %v707
    %v969 = vunpack.c.l.b16 %v708
    %v970 = vunpack.c.l.b16 %v709
    %v971 = vunpack.c.l.b16 %v710
    %v972 = vunpack.c.l.b16 %v711
    %v973 = vunpack.c.l.b16 %v712
    %v974 = vunpack.c.l.b16 %v713
    %v975 = vunpack.c.l.b16 %v714
    %v976 = vunpack.c.l.b16 %v715
    %v977 = vunpack.c.l.b16 %v716
    %v978 = vunpack.c.l.b16 %v717
    %v979 = vunpack.c.l.b16 %v718
    %v980 = vunpack.c.l.b16 %v719
    %v981 = vunpack.c.l.b16 %v720
    %v982 = vunpack.c.l.b16 %v721
    %v983 = vunpack.c.l.b16 %v722
    %v984 = vunpack.c.l.b16 %v723
    %v985 = vunpack.c.l.b16 %v724
    %v986 = vunpack.c.l.b16 %v725
    %v987 = vunpack.c.l.b16 %v726
    %v988 = vunpack.c.l.b16 %v727
    %v989 = vunpack.c.l.b16 %v728
    %v990 = vunpack.c.l.b16 %v729
    %v991 = vunpack.c.l.b16 %v730
    %v992 = vunpack.c.l.b16 %v731
    %v993 = vunpack.c.l.b16 %v732
    %v994 = vunpack.c.l.b16 %v733
    %v995 = vunpack.c.l.b16 %v734
    %v996 = vunpack.c.l.b16 %v735
    %v997 = vunpack.c.l.b16 %v736
    %v998 = vunpack.c.l.b16 %v737
    %v999 = vunpack.c.l.b16 %v738
    %v1000 = vunpack.c.l.b16 %v739
    %v1001 = vunpack.c.l.b16 %v740
    %v1002 = vunpack.c.l.b16 %v741
    %v1003 = vunpack.c.l.b16 %v742
    %v1004 = vunpack.c.l.b16 %v743
    %v1005 = vunpack.c.l.b16 %v744
    %v1006 = vunpack.c.l.b16 %v745
    %v1007 = vunpack.c.l.b16 %v746
    %v1008 = vunpack.c.l.b16 %v747
    %v1009 = vunpack.c.l.b16 %v748
    %v1010 = vunpack.c.l.b16 %v749
    %v1011 = vunpack.c.l.b16 %v750
    %v1012 = vunpack.c.l.b16 %v751
    %v1013 = vunpack.c.l.b16 %v752
    %v1014 = vunpack.c.l.b16 %v753
    %v1015 = vunpack.c.l.b16 %v754
    %v1016 = vunpack.c.l.b16 %v755
    %v1017 = vunpack.c.l.b16 %v756
    %v1018 = vunpack.c.l.b16 %v757
    %v1019 = vunpack.c.l.b16 %v758
    %v1020 = vunpack.c.l.b16 %v759
    %v1021 = vunpack.c.l.b16 %v760
    %v1022 = vunpack.c.l.b16 %v761
    %v1023 = vunpack.c.l.b16 %v762
    %v1024 = vunpack.c.l.b16 %v763
    %v1025 = vunpack.c.l.b16 %v764
    %v1026 = vunpack.c.l.b16 %v765
    %v1027 = vunpack.c.l.b16 %v766
    %v1028 = vunpack.c.l.b16 %v767
    %v1029 = vunpack.c.l.b16 %v768
    %v1030 = vunpack.c.l.b16 %v769
    %v1031 = vunpack.c.l.b16 %v770
    %v1032 = vunpack.c.l.b16 %v771
    %v1033 = vunpack.c.l.b16 %v772
    %v1034 = vunpack.c.l.b16 %v773
    %v1035 = vunpack.c.l.b16 %v774
    %v1036 = vunpack.c.l.b16 %v775
    %v1037 = vunpack.c.l.b16 %v776
    %v1038 = vunpack.c.l.b16 %v777
    %v1039 = vunpack.c.l.b16 %v778
    %v1040 = vunpack.c.l.b16 %v779
    %v1041 = vunpack.c.l.b16 %v780
    %v1042 = vunpack.c.l.b16 %v781
    %v1043 = vunpack.c.l.b16 %v782
    %v1044 = vunpack.c.l.b16 %v783
    %v1045 = vunpack.c.l.b16 %v784
    %v1046 = vunpack.c.l.b16 %v785
    %v1047 = vunpack.c.l.b16 %v786
    %v1048 = vunpack.c.l.b16 %v787
    %v1049 = vunpack.c.l.b16 %v788
    %v1050 = vunpack.c.l.b16 %v789
    %v1051 = vpack.c.b16 %v924, %v923
    %v1052 = vpack.c.b16 %v926, %v925
    %v1053 = vpack.c.b16 %v928, %v927
    %v1054 = vpack.c.b16 %v930, %v929
    %v1055 = vpack.c.b16 %v932, %v931
    %v1056 = vpack.c.b16 %v934, %v933
    %v1057 = vpack.c.b16 %v936, %v935
    %v1058 = vpack.c.b16 %v938, %v937
    %v1059 = vpack.c.b16 %v940, %v939
    %v1060 = vpack.c.b16 %v942, %v941
    %v1061 = vpack.c.b16 %v944, %v943
    %v1062 = vpack.c.b16 %v946, %v945
    %v1063 = vpack.c.b16 %v948, %v947
    %v1064 = vpack.c.b16 %v950, %v949
    %v1065 = vpack.c.b16 %v952, %v951
    %v1066 = vpack.c.b16 %v954, %v953
    %v1067 = vpack.c.b16 %v956, %v955
    %v1068 = vpack.c.b16 %v958, %v957
    %v1069 = vpack.c.b16 %v960, %v959
    %v1070 = vpack.c.b16 %v962, %v961
    %v1071 = vpack.c.b16 %v964, %v963
    %v1072 = vpack.c.b16 %v966, %v965
    %v1073 = vpack.c.b16 %v968, %v967
    %v1074 = vpack.c.b16 %v970, %v969
    %v1075 = vpack.c.b16 %v972, %v971
    %v1076 = vpack.c.b16 %v974, %v973
    %v1077 = vpack.c.b16 %v976, %v975
    %v1078 = vpack.c.b16 %v978, %v977
    %v1079 = vpack.c.b16 %v980, %v979
    %v1080 = vpack.c.b16 %v982, %v981
    %v1081 = vpack.c.b16 %v984, %v983
    %v1082 = vpack.c.b16 %v986, %v985
    %v1083 = vpack.c.b16 %v988, %v987
    %v1084 = vpack.c.b16 %v990, %v989
    %v1085 = vpack.c.b16 %v992, %v991
    %v1086 = vpack.c.b16 %v994, %v993
    %v1087 = vpack.c.b16 %v996, %v995
    %v1088 = vpack.c.b16 %v998, %v997
    %v1089 = vpack.c.b16 %v1000, %v999
    %v1090 = vpack.c.b16 %v1002, %v1001
    %v1091 = vpack.c.b16 %v1004, %v1003
    %v1092 = vpack.c.b16 %v1006, %v1005
    %v1093 = vpack.c.b16 %v1008, %v1007
    %v1094 = vpack.c.b16 %v1010, %v1009
    %v1095 = vpack.c.b16 %v1012, %v1011
    %v1096 = vpack.c.b16 %v1014, %v1013
    %v1097 = vpack.c.b16 %v1016, %v1015
    %v1098 = vpack.c.b16 %v1018, %v1017
    %v1099 = vpack.c.b16 %v1020, %v1019
    %v1100 = vpack.c.b16 %v1022, %v1021
    %v1101 = vpack.c.b16 %v1024, %v1023
    %v1102 = vpack.c.b16 %v1026, %v1025
    %v1103 = vpack.c.b16 %v1028, %v1027
    %v1104 = vpack.c.b16 %v1030, %v1029
    %v1105 = vpack.c.b16 %v1032, %v1031
    %v1106 = vpack.c.b16 %v1034, %v1033
    %v1107 = vpack.c.b16 %v1036, %v1035
    %v1108 = vpack.c.b16 %v1038, %v1037
    %v1109 = vpack.c.b16 %v1040, %v1039
    %v1110 = vpack.c.b16 %v1042, %v1041
    %v1111 = vpack.c.b16 %v1044, %v1043
    %v1112 = vpack.c.b16 %v1046, %v1045
    %v1113 = vpack.c.b16 %v1048, %v1047
    %v1114 = vpack.c.b16 %v1050, %v1049
    %1179 = vmatprep.subr.bf16.mxu0 0
    %1180 = vmatpush1.bf16.msra.mxu0 %v1051
    %1181 = vmatprep.subr.bf16.mxu0 0
    %1182 = vmatpush1.bf16.msra.mxu0 %v1052
    %1183 = vmatprep.subr.bf16.mxu0 0
    %1184 = vmatpush1.bf16.msra.mxu0 %v1053
    %1185 = vmatprep.subr.bf16.mxu0 0
    %1186 = vmatpush1.bf16.msra.mxu0 %v1054
    %1187 = vmatprep.subr.bf16.mxu0 0
    %1188 = vmatpush1.bf16.msra.mxu0 %v1055
    %1189 = vmatprep.subr.bf16.mxu0 0
    %1190 = vmatpush1.bf16.msra.mxu0 %v1056
    %1191 = vmatprep.subr.bf16.mxu0 0
    %1192 = vmatpush1.bf16.msra.mxu0 %v1057
    %1193 = vmatprep.subr.bf16.mxu0 0
    %1194 = vmatpush1.bf16.msra.mxu0 %v1058
    %1195 = vmatprep.subr.bf16.mxu0 0
    %1196 = vmatpush1.bf16.msra.mxu0 %v1059
    %1197 = vmatprep.subr.bf16.mxu0 0
    %1198 = vmatpush1.bf16.msra.mxu0 %v1060
    %1199 = vmatprep.subr.bf16.mxu0 0
    %1200 = vmatpush1.bf16.msra.mxu0 %v1061
    %1201 = vmatprep.subr.bf16.mxu0 0
    %1202 = vmatpush1.bf16.msra.mxu0 %v1062
    %1203 = vmatprep.subr.bf16.mxu0 0
    %1204 = vmatpush1.bf16.msra.mxu0 %v1063
    %1205 = vmatprep.subr.bf16.mxu0 0
    %1206 = vmatpush1.bf16.msra.mxu0 %v1064
    %1207 = vmatprep.subr.bf16.mxu0 0
    %1208 = vmatpush1.bf16.msra.mxu0 %v1065
    %1209 = vmatprep.subr.bf16.mxu0 0
    %1210 = vmatpush1.bf16.msra.mxu0 %v1066
    %1211 = vmatprep.mubr.bf16.mxu0 %v655
    %1212 = vmatmul.mubr.bf16.gmra.mrb[0].mxu0 %v654
    %v1213 = vpop.f32.mrb[0].mxu0
    %v1214 = vadd.f32 %v794, %v1213
    %v1215 = vpop.f32.mrb[0].mxu0
    %v1216 = vpop.f32.mrb[0].mxu0
    %v1217 = vpop.f32.mrb[0].mxu0
    %1218 = vdwg.mxu0
    %1219 = vmatprep.subr.bf16.mxu0 0
    %1220 = vmatpush1.bf16.msra.mxu0 %v1067
    %1221 = vmatprep.subr.bf16.mxu0 0
    %1222 = vmatpush1.bf16.msra.mxu0 %v1068
    %1223 = vmatprep.subr.bf16.mxu0 0
    %1224 = vmatpush1.bf16.msra.mxu0 %v1069
    %1225 = vmatprep.subr.bf16.mxu0 0
    %1226 = vmatpush1.bf16.msra.mxu0 %v1070
    %1227 = vmatprep.subr.bf16.mxu0 0
    %1228 = vmatpush1.bf16.msra.mxu0 %v1071
    %1229 = vmatprep.subr.bf16.mxu0 0
    %1230 = vmatpush1.bf16.msra.mxu0 %v1072
    %1231 = vmatprep.subr.bf16.mxu0 0
    %1232 = vmatpush1.bf16.msra.mxu0 %v1073
    %1233 = vmatprep.subr.bf16.mxu0 0
    %1234 = vmatpush1.bf16.msra.mxu0 %v1074
    %1235 = vmatprep.subr.bf16.mxu0 0
    %1236 = vmatpush1.bf16.msra.mxu0 %v1075
    %1237 = vmatprep.subr.bf16.mxu0 0
    %1238 = vmatpush1.bf16.msra.mxu0 %v1076
    %1239 = vmatprep.subr.bf16.mxu0 0
    %1240 = vmatpush1.bf16.msra.mxu0 %v1077
    %1241 = vmatprep.subr.bf16.mxu0 0
    %1242 = vmatpush1.bf16.msra.mxu0 %v1078
    %1243 = vmatprep.subr.bf16.mxu0 0
    %1244 = vmatpush1.bf16.msra.mxu0 %v1079
    %1245 = vmatprep.subr.bf16.mxu0 0
    %1246 = vmatpush1.bf16.msra.mxu0 %v1080
    %1247 = vmatprep.subr.bf16.mxu0 0
    %1248 = vmatpush1.bf16.msra.mxu0 %v1081
    %1249 = vmatprep.subr.bf16.mxu0 0
    %1250 = vmatpush1.bf16.msra.mxu0 %v1082
    %1251 = vmatprep.mubr.bf16.mxu0 %v657
    %1252 = vmatmul.mubr.bf16.gmra.mrb[0].mxu0 %v656
    %v1253 = vpop.f32.mrb[0].mxu0
    %v1254 = vadd.f32 %v1214, %v1253
    %v1255 = vpop.f32.mrb[0].mxu0
    %v1256 = vpop.f32.mrb[0].mxu0
    %v1257 = vpop.f32.mrb[0].mxu0
    %1258 = vdwg.mxu0
    %1259 = vmatprep.subr.bf16.mxu0 0
    %1260 = vmatpush1.bf16.msra.mxu0 %v1083
    %1261 = vmatprep.subr.bf16.mxu0 0
    %1262 = vmatpush1.bf16.msra.mxu0 %v1084
    %1263 = vmatprep.subr.bf16.mxu0 0
    %1264 = vmatpush1.bf16.msra.mxu0 %v1085
    %1265 = vmatprep.subr.bf16.mxu0 0
    %1266 = vmatpush1.bf16.msra.mxu0 %v1086
    %1267 = vmatprep.subr.bf16.mxu0 0
    %1268 = vmatpush1.bf16.msra.mxu0 %v1087
    %1269 = vmatprep.subr.bf16.mxu0 0
    %1270 = vmatpush1.bf16.msra.mxu0 %v1088
    %1271 = vmatprep.subr.bf16.mxu0 0
    %1272 = vmatpush1.bf16.msra.mxu0 %v1089
    %1273 = vmatprep.subr.bf16.mxu0 0
    %1274 = vmatpush1.bf16.msra.mxu0 %v1090
    %1275 = vmatprep.subr.bf16.mxu0 0
    %1276 = vmatpush1.bf16.msra.mxu0 %v1091
    %1277 = vmatprep.subr.bf16.mxu0 0
    %1278 = vmatpush1.bf16.msra.mxu0 %v1092
    %1279 = vmatprep.subr.bf16.mxu0 0
    %1280 = vmatpush1.bf16.msra.mxu0 %v1093
    %1281 = vmatprep.subr.bf16.mxu0 0
    %1282 = vmatpush1.bf16.msra.mxu0 %v1094
    %1283 = vmatprep.subr.bf16.mxu0 0
    %1284 = vmatpush1.bf16.msra.mxu0 %v1095
    %1285 = vmatprep.subr.bf16.mxu0 0
    %1286 = vmatpush1.bf16.msra.mxu0 %v1096
    %1287 = vmatprep.subr.bf16.mxu0 0
    %1288 = vmatpush1.bf16.msra.mxu0 %v1097
    %1289 = vmatprep.subr.bf16.mxu0 0
    %1290 = vmatpush1.bf16.msra.mxu0 %v1098
    %1291 = vmatprep.mubr.bf16.mxu0 %v659
    %1292 = vmatmul.mubr.bf16.gmra.mrb[0].mxu0 %v658
    %v1293 = vpop.f32.mrb[0].mxu0
    %v1294 = vadd.f32 %v1254, %v1293
    %v1295 = vpop.f32.mrb[0].mxu0
    %v1296 = vpop.f32.mrb[0].mxu0
    %v1297 = vpop.f32.mrb[0].mxu0
    %1298 = vdwg.mxu0
    %1299 = vmatprep.subr.bf16.mxu0 0
    %1300 = vmatpush1.bf16.msra.mxu0 %v1099
    %1301 = vmatprep.subr.bf16.mxu0 0
    %1302 = vmatpush1.bf16.msra.mxu0 %v1100
    %1303 = vmatprep.subr.bf16.mxu0 0
    %1304 = vmatpush1.bf16.msra.mxu0 %v1101
    %1305 = vmatprep.subr.bf16.mxu0 0
    %1306 = vmatpush1.bf16.msra.mxu0 %v1102
    %1307 = vmatprep.subr.bf16.mxu0 0
    %1308 = vmatpush1.bf16.msra.mxu0 %v1103
    %1309 = vmatprep.subr.bf16.mxu0 0
    %1310 = vmatpush1.bf16.msra.mxu0 %v1104
    %1311 = vmatprep.subr.bf16.mxu0 0
    %1312 = vmatpush1.bf16.msra.mxu0 %v1105
    %1313 = vmatprep.subr.bf16.mxu0 0
    %1314 = vmatpush1.bf16.msra.mxu0 %v1106
    %1315 = vmatprep.subr.bf16.mxu0 0
    %1316 = vmatpush1.bf16.msra.mxu0 %v1107
    %1317 = vmatprep.subr.bf16.mxu0 0
    %1318 = vmatpush1.bf16.msra.mxu0 %v1108
    %1319 = vmatprep.subr.bf16.mxu0 0
    %1320 = vmatpush1.bf16.msra.mxu0 %v1109
    %1321 = vmatprep.subr.bf16.mxu0 0
    %1322 = vmatpush1.bf16.msra.mxu0 %v1110
    %1323 = vmatprep.subr.bf16.mxu0 0
    %1324 = vmatpush1.bf16.msra.mxu0 %v1111
    %1325 = vmatprep.subr.bf16.mxu0 0
    %1326 = vmatpush1.bf16.msra.mxu0 %v1112
    %1327 = vmatprep.subr.bf16.mxu0 0
    %1328 = vmatpush1.bf16.msra.mxu0 %v1113
    %1329 = vmatprep.subr.bf16.mxu0 0
    %1330 = vmatpush1.bf16.msra.mxu0 %v1114
    %1331 = vmatprep.mubr.bf16.mxu0 %v661
    %1332 = vmatmul.mubr.bf16.gmra.mrb[0].mxu0 %v660
    %v1333 = vpop.f32.mrb[0].mxu0
    %v1334 = vadd.f32 %v1294, %v1333
    %v1335 = vpop.f32.mrb[0].mxu0
    %v1336 = vpop.f32.mrb[0].mxu0
    %v1337 = vpop.f32.mrb[0].mxu0
    %1338 = vdwg.mxu0
    %1339 = vadd.xlane.f32.xlu0 %v1334
    %v1340 = vpop.xlane.xlu0 %1339
    %v1341 = vmul.f32 %v1334, %v1334
    %1342 = vadd.xlane.f32.xlu0 %v1341
    %v1343 = vpop.xlane.xlu0 %1342
    %v1344 = vmul.f32 %v1340, 0.0078125
    %v1345 = vmul.f32 %v1343, 0.0078125
    %v1346 = vmul.f32 %v1344, %v1344
    %v1347 = vsub.f32 %v1345, %v1346
    %v1348 = vsub.f32 %v1334, %v1344
    %v1349 = vadd.f32 %v1347, 1e-05
    %v1350 = vrsqrt.pop %v1349
    %v1351 = vmul.f32 %v1348, %v1350
    %v1352 = vlaneseq
    %v1353 = vshrl.u32 %v1352, 7
    %v1354 = vsub.s32 1, %v1353
    %v1355 = vrot.slane %v790, %v1354
    %v1356 = vmul.f32 %v1351, %v1355
    %v1357 = vlaneseq
    %v1358 = vshrl.u32 %v1357, 7
    %v1359 = vsub.s32 2, %v1358
    %v1360 = vrot.slane %v790, %v1359
    %v1361 = vadd.f32 %v1356, %v1360
    %v1362 = vtanh.pop %v1361
    %v1363 = vpack.c.bf16 %v1362, %v1362
    %v1364 = vld [vmem:[#allocation10] sm:$0xf]
    %v1365 = vld [vmem:[#allocation10 + $0x4] sm:$0xf]
    %v1366 = vld [vmem:[#allocation10 + $0x8] sm:$0xf]
    %v1367 = vld [vmem:[#allocation10 + $0xc] sm:$0xf]
    %v1368 = vld [vmem:[#allocation10 + $0x10] sm:$0xf]
    %v1369 = vld [vmem:[#allocation10 + $0x14] sm:$0xf]
    %v1370 = vld [vmem:[#allocation10 + $0x18] sm:$0xf]
    %v1371 = vld [vmem:[#allocation10 + $0x1c] sm:$0xf]
    %v1372 = vld [vmem:[#allocation10 + $0x20] sm:$0xf]
    %v1373 = vld [vmem:[#allocation10 + $0x24] sm:$0xf]
    %v1374 = vld [vmem:[#allocation10 + $0x28] sm:$0xf]
    %v1375 = vld [vmem:[#allocation10 + $0x2c] sm:$0xf]
    %v1376 = vld [vmem:[#allocation10 + $0x30] sm:$0xf]
    %v1377 = vld [vmem:[#allocation10 + $0x34] sm:$0xf]
    %v1378 = vld [vmem:[#allocation10 + $0x38] sm:$0xf]
    %v1379 = vld [vmem:[#allocation10 + $0x3c] sm:$0xf]
    %v1380 = vld [vmem:[%s6] sm:$0x1]
    %v1382 = vlaneseq
    %v1383 = vshrl.u32 %v1382, 7
    %v1384 = vsub.s32 0, %v1383
    %v1385 = vrot.slane %v1380, %v1384
    %v1403 = vunpack.c.l.b16 %v1364
    %v1404 = vunpack.c.l.b16 %v1365
    %v1405 = vunpack.c.l.b16 %v1366
    %v1406 = vunpack.c.l.b16 %v1367
    %v1407 = vunpack.c.l.b16 %v1368
    %v1408 = vunpack.c.l.b16 %v1369
    %v1409 = vunpack.c.l.b16 %v1370
    %v1410 = vunpack.c.l.b16 %v1371
    %v1411 = vunpack.c.l.b16 %v1372
    %v1412 = vunpack.c.l.b16 %v1373
    %v1413 = vunpack.c.l.b16 %v1374
    %v1414 = vunpack.c.l.b16 %v1375
    %v1415 = vunpack.c.l.b16 %v1376
    %v1416 = vunpack.c.l.b16 %v1377
    %v1417 = vunpack.c.l.b16 %v1378
    %v1418 = vunpack.c.l.b16 %v1379
    %v1419 = vpack.c.b16 %v1404, %v1403
    %v1420 = vpack.c.b16 %v1406, %v1405
    %v1421 = vpack.c.b16 %v1408, %v1407
    %v1422 = vpack.c.b16 %v1410, %v1409
    %v1423 = vpack.c.b16 %v1412, %v1411
    %v1424 = vpack.c.b16 %v1414, %v1413
    %v1425 = vpack.c.b16 %v1416, %v1415
    %v1426 = vpack.c.b16 %v1418, %v1417
    %1435 = vmatprep.subr.bf16.mxu0 0
    %1436 = vmatpush1.bf16.msra.mxu0 %v1419
    %1437 = vmatprep.subr.bf16.mxu0 0
    %1438 = vmatpush1.bf16.msra.mxu0 %v1420
    %1439 = vmatprep.subr.bf16.mxu0 0
    %1440 = vmatpush1.bf16.msra.mxu0 %v1421
    %1441 = vmatprep.subr.bf16.mxu0 0
    %1442 = vmatpush1.bf16.msra.mxu0 %v1422
    %1443 = vmatprep.subr.bf16.mxu0 0
    %1444 = vmatpush1.bf16.msra.mxu0 %v1423
    %1445 = vmatprep.subr.bf16.mxu0 0
    %1446 = vmatpush1.bf16.msra.mxu0 %v1424
    %1447 = vmatprep.subr.bf16.mxu0 0
    %1448 = vmatpush1.bf16.msra.mxu0 %v1425
    %1449 = vmatprep.subr.bf16.mxu0 0
    %1450 = vmatpush1.bf16.msra.mxu0 %v1426
    %1451 = vmatprep.subr.bf16.mxu0 0
    %1452 = vmatpush1.bf16.msra.mxu0 0
    %1453 = vmatprep.subr.bf16.mxu0 0
    %1454 = vmatpush1.bf16.msra.mxu0 0
    %1455 = vmatprep.subr.bf16.mxu0 0
    %1456 = vmatpush1.bf16.msra.mxu0 0
    %1457 = vmatprep.subr.bf16.mxu0 0
    %1458 = vmatpush1.bf16.msra.mxu0 0
    %1459 = vmatprep.subr.bf16.mxu0 0
    %1460 = vmatpush1.bf16.msra.mxu0 0
    %1461 = vmatprep.subr.bf16.mxu0 0
    %1462 = vmatpush1.bf16.msra.mxu0 0
    %1463 = vmatprep.subr.bf16.mxu0 0
    %1464 = vmatpush1.bf16.msra.mxu0 0
    %1465 = vmatprep.subr.bf16.mxu0 0
    %1466 = vmatpush1.bf16.msra.mxu0 0
    %1467 = vmatprep.mubr.bf16.mxu0 0
    %1468 = vmatmul.mubr.bf16.gmra.mrb[0].mxu0 %v1363
    %v1469 = vpop.f32.mrb[0].mxu0
    %v1470 = vadd.f32 %v1385, %v1469
    %v1471 = vpop.f32.mrb[0].mxu0
    %v1472 = vpop.f32.mrb[0].mxu0
    %v1473 = vpop.f32.mrb[0].mxu0
    %1474 = vdwg.mxu0
    %v1475 = vlaneseq
    %v1476 = vand.u32 %v1475, 127
    %vm1477 = vcmp.ge.s32.totalorder %v1476, 4
    %vm1478 = vcmp.lt.s32.totalorder %v1476, 8
    %vm1479 = vmand %vm1477, %vm1478
    %v1480 = vmax.f32 %v1470, -5.0
    %v1481 = vmin.f32 %v1480, 2.0
    %v1482 = vsel %vm1479, %v1481, %v1470
    %1483 = vst [vmem:[#allocation11] sm:$0xff] %v1482
    // Predicated region
    $region50: #{tpu_custom_call.1} parent=1 // pred_check
      _
    $region51: #{tpu_custom_call.1} parent=1 // pred_check_branch
      %1485 = sbr.rel (0) target = $region53
    $region52: #{tpu_custom_call.1} parent=1 // pred_region
      %s1487 = ssub.s32 128, 128
      %1488 = vsyncadd [#allocation4], %s1487
      %s1490 = sshll.u32 [#allocation11], 4
      %s1491 = int_to_ptr.vmem [resolvable:$true] %s1490
      %1493 = dma.vmem_to_hbm [thread:$0]  %s1491, 128, %s7, [#allocation4]
    $region53: #{tpu_custom_call.1} parent=1 // pred_fallthru
      _
    // Predicated region
    $region54: #{tpu_custom_call.1} parent=1 // pred_check
      _
    $region55: #{tpu_custom_call.1} parent=1 // pred_check_branch
      %1495 = sbr.rel (0) target = $region57
    $region56: #{tpu_custom_call.1} parent=1 // pred_region
      %1496 = dma.done [#allocation4], 128
    $region57: #{tpu_custom_call.1} parent=1 // pred_fallthru
      _
    %1497 = vsyncpa [#allocation3], 1
    %1498 = vsyncpa [#allocation6], 1
    %1499 = vsyncpa [#allocation9], 1
    %1500 = vsyncpa [#allocation4], 1

</llo_original>
